<compile_context>
chip_gen: v6e
topology: v6e:2x2x1
jax: 0.10.0
libtpu: 0.0.40
codegen_flags: <defaults>
</compile_context>

<pallas_src>
import jax
import jax.numpy as jnp
from jax.experimental import pallas as pl
from jax.experimental.pallas import tpu as pltpu

LANE = 128
SUBLANE = 8


def _round_up(x, m):
    return ((x + m - 1) // m) * m


def _make_node_model_kernel(num_edge_sets, fe_real, fn_real, fold_count,
                            num_k_per_set):
    """Build the kernel closed over static structure.

    fe_real[i]   : true (unpadded) feature width of edge set i.
    fn_real      : true node-feature width (LayerNorm runs over these lanes only).
    fold_count[i]: True  -> receive count lives in acc column fe_real[i]
                            (folded into the scatter matmul via a ones column),
                   False -> count accumulated separately via an XLU lane reduce.
    num_k_per_set[i]: number of real edge chunks for edge set i.
    """
    num_k_static = max(num_k_per_set) if num_k_per_set else 1

    # scratch slot of the separate count accumulator (only for non-folded sets)
    cnt_slot, s = {}, 0
    for i, fold in enumerate(fold_count):
        if not fold:
            cnt_slot[i] = s
            s += 1

    def kernel(*refs):
        node_ref = refs[0]
        es_refs = refs[1:1 + 2 * num_edge_sets]            # (ef_0, rc_0, ef_1, rc_1, ...)
        w1n_ref = refs[1 + 2 * num_edge_sets]
        w1e_refs = refs[2 + 2 * num_edge_sets:2 + 3 * num_edge_sets]
        (b1_ref, w2_ref, b2_ref, w3_ref, b3_ref,
         gamma_ref, beta_ref) = refs[2 + 3 * num_edge_sets:9 + 3 * num_edge_sets]
        out_ref = refs[9 + 3 * num_edge_sets]
        acc_refs = refs[10 + 3 * num_edge_sets:10 + 4 * num_edge_sets]
        cnt_refs = refs[10 + 4 * num_edge_sets:]

        n_tile = node_ref.shape[1]
        n_idx = pl.program_id(0)            # node-tile axis   ("parallel")
        k_idx = pl.program_id(2)            # edge-chunk axis  ("arbitrary", innermost)
        num_k = pl.num_programs(2)

        # ---- init accumulators at the first edge chunk ----------------------
        @pl.when(k_idx == 0)
        def _():
            for i in range(num_edge_sets):
                acc_refs[i][...] = jnp.zeros_like(acc_refs[i])
            for r in cnt_refs:
                r[...] = jnp.zeros_like(r)

        # ---- accumulate this edge chunk (bf16 one-hot matmul on the MXU) ----
        for i in range(num_edge_sets):
            def accumulate(i=i):
                ef = es_refs[2 * i][0]                       # (E_tile, Fe_pad) bf16
                rc = es_refs[2 * i + 1][0]                   # (1, E_tile) int32
                e_tile = ef.shape[0]
                # shift the (1, E_tile) receivers instead of the (n_tile, E_tile)
                # iota -> one less full-size VALU op on the critical path
                rc_local = rc - n_idx * n_tile
                eq = (jax.lax.broadcasted_iota(jnp.int32, (n_tile, e_tile), 0)
                      == rc_local)                           # pad rc=-1 never matches
                onehot = eq.astype(jnp.bfloat16)             # exact 0/1 in bf16
                acc_refs[i][...] += jnp.dot(onehot, ef,
                                            preferred_element_type=jnp.float32)
                if not fold_count[i]:
                    cnt_refs[cnt_slot[i]][...] += jnp.sum(
                        eq.astype(jnp.float32), axis=-1, keepdims=True)

            if num_k_per_set[i] == num_k_static:
                accumulate()
            else:
                # small edge set: its clamped block index stops changing, so the
                # chunk is neither re-DMAed nor computed
                pl.when(k_idx < num_k_per_set[i])(accumulate)

        # ---- finalize: mean, MLP, LayerNorm, residual ------------------------
        @pl.when(k_idx == num_k - 1)
        def _():
            x = node_ref[0]                                  # (n_tile, Fn_pad) f32

            # first Linear applied to the (virtual) concat via split bf16 matmuls
            h = jnp.dot(x.astype(jnp.bfloat16), w1n_ref[...],
                        preferred_element_type=jnp.float32)
            for i in range(num_edge_sets):
                acc = acc_refs[i][...]                       # (n_tile, Fe_pad) f32
                if fold_count[i]:
                    cnt = acc[:, fe_real[i]:fe_real[i] + 1]  # folded count column
                else:
                    cnt = cnt_refs[cnt_slot[i]][...]
                inv = pl.reciprocal(jnp.maximum(cnt, 1.0), approx=True)
                mean_bf = (acc * inv).astype(jnp.bfloat16)   # mean = sum / cnt
                # folded count column hits a zero row of w1e -> contributes nothing
                h = h + jnp.dot(mean_bf, w1e_refs[i][...],
                                preferred_element_type=jnp.float32)
            h = jnp.maximum(h + b1_ref[...], 0.0)            # ReLU (f32)

            h = jnp.dot(h.astype(jnp.bfloat16), w2_ref[...],
                        preferred_element_type=jnp.float32) + b2_ref[...]
            h = jnp.maximum(h, 0.0)                          # ReLU

            y = jnp.dot(h.astype(jnp.bfloat16), w3_ref[...],
                        preferred_element_type=jnp.float32) + b3_ref[...]

            # masked LayerNorm over the first fn_real lanes (padding lanes are zero)
            fn_pad = y.shape[-1]
            mask = (jax.lax.broadcasted_iota(jnp.int32, (1, fn_pad), 1)
                    < fn_real).astype(jnp.float32)
            inv_fn = 1.0 / float(fn_real)
            mu = jnp.sum(y * mask, axis=-1, keepdims=True) * inv_fn
            d = (y - mu) * mask
            var = jnp.sum(d * d, axis=-1, keepdims=True) * inv_fn
            y = d * jax.lax.rsqrt(var + 1e-5) * gamma_ref[...] + beta_ref[...]

            # residual: graph['node_features'] += feature
            out_ref[0] = x + y

    return kernel


def node_model_forward(graph, params, *, n_tile=None, e_tile=None, interpret=False):
    """Runs the NodeModel forward pass; returns graph with updated node_features."""
    x = graph["node_features"]
    edge_sets = graph["edge_sets"]
    B, N, Fn = x.shape
    H = int(params["b1"].shape[-1])
    Fout = int(params["b3"].shape[-1])
    assert Fout == Fn, "output_size must equal node feature width for residual add"

    num_es = len(edge_sets)
    fe_real = [int(es["features"].shape[2]) for es in edge_sets]
    e_real = [int(es["features"].shape[1]) for es in edge_sets]
    max_e = max(e_real) if e_real else 1

    # ---- tile sizes ----------------------------------------------------------
    if n_tile is None:
        # large tiles for arithmetic intensity of the edge stream; when B == 1
        # split the node axis so the "parallel" grid extent stays >= 2
        want = N if B >= 2 else max(1, -(-N // 2))
        n_tile = min(1024, _round_up(want, SUBLANE))
    if e_tile is None:
        e_tile = min(512, _round_up(max_e, LANE))
    n_pad = _round_up(N, n_tile)
    num_n = n_pad // n_tile

    # per-edge-set chunk counts (no shared max-E padding)
    e_pads = [_round_up(max(e, 1), e_tile) for e in e_real]
    num_k_per_set = [ep // e_tile for ep in e_pads]
    num_k = max(num_k_per_set) if num_k_per_set else 1

    fn_pad = _round_up(Fn, LANE)
    h_pad = _round_up(H, LANE)
    # fold the count column into a free padding lane when one exists
    fold_count = [(f % LANE) != 0 for f in fe_real]
    fe_pad = [_round_up(f, LANE) if fold else f
              for f, fold in zip(fe_real, fold_count)]

    f32 = jnp.float32
    bf16 = jnp.bfloat16

    # ---- assemble operands & BlockSpecs -------------------------------------
    # TODO(synk): in a real pipeline keep edge features stored pre-padded/bf16
    # upstream to avoid this extra HBM pass per call.
    x_pad = jnp.zeros((B, n_pad, fn_pad), f32).at[:, :N, :Fn].set(x.astype(f32))
    operands = [x_pad]
    in_specs = [pl.BlockSpec((1, n_tile, fn_pad), lambda n, b, k: (b, n, 0))]

    for i, es in enumerate(edge_sets):
        ef = es["features"].astype(f32)
        rc = es["receivers"].astype(jnp.int32)
        E = e_real[i]
        nk = num_k_per_set[i]
        # edge features (+ ones count column if folded), zero-padded, bf16 for MXU
        ef_aug = jnp.zeros((B, e_pads[i], fe_pad[i]), f32)
        ef_aug = ef_aug.at[:, :E, :fe_real[i]].set(ef)
        if fold_count[i]:
            ef_aug = ef_aug.at[:, :E, fe_real[i]].set(1.0)
        ef_aug = ef_aug.astype(bf16)
        # receivers padded with -1 (never matches any node id)
        rc_pad = jnp.full((B, 1, e_pads[i]), -1, jnp.int32).at[:, 0, :E].set(rc)
        operands += [ef_aug, rc_pad]

        if nk == num_k:
            ef_map = lambda n, b, k: (b, k, 0)
            rc_map = lambda n, b, k: (b, 0, k)
        else:
            # clamp: redundant block index is constant -> Pallas skips the re-DMA
            ef_map = lambda n, b, k, nk=nk: (b, jnp.minimum(k, nk - 1), 0)
            rc_map = lambda n, b, k, nk=nk: (b, 0, jnp.minimum(k, nk - 1))
        spec_kwargs = {}
        if nk >= 3:
            # deepen pipelining on the streamed edge inputs when chunks are many
            spec_kwargs["pipeline_mode"] = pl.Buffered(3)
        in_specs += [
            pl.BlockSpec((1, e_tile, fe_pad[i]), ef_map, **spec_kwargs),
            pl.BlockSpec((1, 1, e_tile), rc_map, **spec_kwargs),
        ]

    # split first-layer weight per concatenated segment, zero-pad, bf16 for MXU
    w1 = params["w1"].astype(f32)
    offs = [0]
    for f in [Fn] + fe_real:
        offs.append(offs[-1] + f)

    def pad2(a, r, c, dtype):
        a = jnp.asarray(a, f32)
        return jnp.zeros((r, c), f32).at[:a.shape[0], :a.shape[1]].set(a).astype(dtype)

    w1n = pad2(w1[:Fn], fn_pad, h_pad, bf16)
    w1e = [pad2(w1[offs[i + 1]:offs[i + 2]], fe_pad[i], h_pad, bf16)
           for i in range(num_es)]

    weight_ops = [w1n] + w1e + [
        pad2(params["b1"].reshape(1, H), 1, h_pad, f32),
        pad2(params["w2"], h_pad, h_pad, bf16),
        pad2(params["b2"].reshape(1, H), 1, h_pad, f32),
        pad2(params["w3"], h_pad, fn_pad, bf16),
        pad2(params["b3"].reshape(1, Fn), 1, fn_pad, f32),
        pad2(params["gamma"].reshape(1, Fn), 1, fn_pad, f32),
        pad2(params["beta"].reshape(1, Fn), 1, fn_pad, f32),
    ]
    operands += weight_ops
    in_specs += [pl.BlockSpec(tuple(w.shape), lambda n, b, k: (0, 0)) for w in weight_ops]

    out_spec = pl.BlockSpec((1, n_tile, fn_pad), lambda n, b, k: (b, n, 0))
    scratch = [pltpu.VMEM((n_tile, fe_pad[i]), f32) for i in range(num_es)]
    scratch += [pltpu.VMEM((n_tile, 1), f32)
                for i in range(num_es) if not fold_count[i]]

    kernel = _make_node_model_kernel(num_es, fe_real, Fn, fold_count, num_k_per_set)

    # advisory cost estimate so XLA can schedule around the custom call
    flops = int(2 * B * n_pad * sum(ep * fp for ep, fp in zip(e_pads, fe_pad))
                + 2 * B * n_pad * (fn_pad * h_pad + h_pad * h_pad + h_pad * fn_pad))
    bytes_accessed = int(
        2 * B * n_pad * fn_pad * 4
        + num_n * B * sum(ep * (2 * fp + 4) for ep, fp in zip(e_pads, fe_pad))
        + sum(int(w.size) * w.dtype.itemsize for w in weight_ops))
    cost = pl.CostEstimate(flops=flops,
                           transcendentals=int(B * n_pad * (1 + num_es)),
                           bytes_accessed=bytes_accessed)

    out_pad = pl.pallas_call(
        kernel,
        out_shape=jax.ShapeDtypeStruct((B, n_pad, fn_pad), f32),
        grid_spec=pltpu.PrefetchScalarGridSpec(
            num_scalar_prefetch=0,
            grid=(num_n, B, num_k),
            in_specs=in_specs,
            out_specs=out_spec,
            scratch_shapes=scratch,
        ),
        compiler_params=pltpu.CompilerParams(
            dimension_semantics=("parallel", "parallel", "arbitrary"),
            # larger tiles than the 32 MiB scoped default; still <= v7x's 64 MiB
            vmem_limit_bytes=48 * 1024 * 1024),
        cost_estimate=cost,
        interpret=interpret,
    )(*operands)

    new_graph = dict(graph)
    new_graph["node_features"] = out_pad[:, :N, :Fn]
    return new_graph


# ---------------------------- pure-JAX reference ---------------------------------
def node_model_reference(graph, params):
    x = graph["node_features"]
    B, N, Fn = x.shape
    feats = [x]
    for es in graph["edge_sets"]:
        ef, rc = es["features"], es["receivers"]

        def per_batch(ef_b, rc_b):
            fe = ef_b.shape[-1]
            ssum = jnp.zeros((N, fe), jnp.float32).at[rc_b].add(ef_b)
            cnt = jnp.zeros((N,), jnp.float32).at[rc_b].add(1.0)
            return ssum / jnp.maximum(cnt, 1.0)[:, None]

        feats.append(jax.vmap(per_batch)(ef, rc))
    f = jnp.concatenate(feats, axis=-1)

    h = jax.nn.relu(f @ params["w1"] + params["b1"])
    h = jax.nn.relu(h @ params["w2"] + params["b2"])
    y = h @ params["w3"] + params["b3"]
    mu = jnp.mean(y, -1, keepdims=True)
    var = jnp.mean((y - mu) ** 2, -1, keepdims=True)
    y = (y - mu) * jax.lax.rsqrt(var + 1e-5) * params["gamma"] + params["beta"]
    out = dict(graph)
    out["node_features"] = x + y
    return out


# --------------------------------- demo ------------------------------------------
if __name__ == "__main__":
    key = jax.random.PRNGKey(0)
    ks = jax.random.split(key, 16)

    B, N, Fn = 2, 16, 32          # batch, nodes, node-feature width (= output_size)
    H = 64                        # mlp hidden size
    E0, Fe0 = 64, 32              # edge set 0
    E1, Fe1 = 48, 16              # edge set 1
    Fin = Fn + Fe0 + Fe1

    graph = {
        "node_features": jax.random.normal(ks[0], (B, N, Fn), jnp.float32),
        "edge_sets": [
            {
                "features": jax.random.normal(ks[1], (B, E0, Fe0), jnp.float32),
                "receivers": jax.random.randint(ks[2], (B, E0), 0, N, jnp.int32),
            },
            {
                "features": jax.random.normal(ks[3], (B, E1, Fe1), jnp.float32),
                "receivers": jax.random.randint(ks[4], (B, E1), 0, N, jnp.int32),
            },
        ],
    }

    params = {
        "w1": jax.random.normal(ks[5], (Fin, H), jnp.float32) * 0.1,
        "b1": jax.random.normal(ks[6], (H,), jnp.float32) * 0.01,
        "w2": jax.random.normal(ks[7], (H, H), jnp.float32) * 0.1,
        "b2": jax.random.normal(ks[8], (H,), jnp.float32) * 0.01,
        "w3": jax.random.normal(ks[9], (H, Fn), jnp.float32) * 0.1,
        "b3": jax.random.normal(ks[10], (Fn,), jnp.float32) * 0.01,
        "gamma": jnp.ones((Fn,), jnp.float32),
        "beta": jnp.zeros((Fn,), jnp.float32),
    }

    out_graph = node_model_forward(graph, params)
    out = jax.block_until_ready(out_graph["node_features"])

    ref = node_model_reference(graph, params)["node_features"]
    # bf16 weights/activations on the MXU + approx reciprocal introduce a few-percent
    # deviation vs the exact f32 reference; structural bugs would be O(1).
    assert jnp.allclose(out, ref, atol=1e-1, rtol=1e-1), "mismatch vs reference"

    print("KERNEL_OK")
</pallas_src>

<mosaic_0001>
module attributes {stable_mosaic.version = 11 : i64} {
  func.func @kernel(%arg0: i32, %arg1: i32, %arg2: i32, %arg3: memref<1x16x128xf32, #tpu.memory_space<vmem>>, %arg4: memref<1x128x128xbf16, #tpu.memory_space<vmem>>, %arg5: memref<1x1x128xi32, #tpu.memory_space<vmem>>, %arg6: memref<1x128x128xbf16, #tpu.memory_space<vmem>>, %arg7: memref<1x1x128xi32, #tpu.memory_space<vmem>>, %arg8: memref<128x128xbf16, #tpu.memory_space<vmem>>, %arg9: memref<128x128xbf16, #tpu.memory_space<vmem>>, %arg10: memref<128x128xbf16, #tpu.memory_space<vmem>>, %arg11: memref<1x128xf32, #tpu.memory_space<vmem>>, %arg12: memref<128x128xbf16, #tpu.memory_space<vmem>>, %arg13: memref<1x128xf32, #tpu.memory_space<vmem>>, %arg14: memref<128x128xbf16, #tpu.memory_space<vmem>>, %arg15: memref<1x128xf32, #tpu.memory_space<vmem>>, %arg16: memref<1x128xf32, #tpu.memory_space<vmem>>, %arg17: memref<1x128xf32, #tpu.memory_space<vmem>>, %arg18: memref<1x16x128xf32, #tpu.memory_space<vmem>>, %arg19: memref<16x128xf32, #tpu.memory_space<vmem>>, %arg20: memref<16x128xf32, #tpu.memory_space<vmem>>) attributes {dimension_semantics = [#tpu.dimension_semantics<parallel>, #tpu.dimension_semantics<parallel>, #tpu.dimension_semantics<arbitrary>], iteration_bounds = array<i64: 1, 2, 1>, scalar_prefetch = 0 : i64, scratch_operands = 2 : i64, tpu.core_type = #tpu.core_type<tc>, window_params = [{transform_indices = @transform_0, window_bounds = array<i64: 1, 16, 128>}, {transform_indices = @transform_1, window_bounds = array<i64: 1, 128, 128>}, {transform_indices = @transform_2, window_bounds = array<i64: 1, 1, 128>}, {transform_indices = @transform_3, window_bounds = array<i64: 1, 128, 128>}, {transform_indices = @transform_4, window_bounds = array<i64: 1, 1, 128>}, {pipeline_mode = #tpu.pipeline_mode<synchronous>, transform_indices = @transform_5, window_bounds = array<i64: 128, 128>}, {pipeline_mode = #tpu.pipeline_mode<synchronous>, transform_indices = @transform_6, window_bounds = array<i64: 128, 128>}, {pipeline_mode = #tpu.pipeline_mode<synchronous>, transform_indices = @transform_7, window_bounds = array<i64: 128, 128>}, {pipeline_mode = #tpu.pipeline_mode<synchronous>, transform_indices = @transform_8, window_bounds = array<i64: 1, 128>}, {pipeline_mode = #tpu.pipeline_mode<synchronous>, transform_indices = @transform_9, window_bounds = array<i64: 128, 128>}, {pipeline_mode = #tpu.pipeline_mode<synchronous>, transform_indices = @transform_10, window_bounds = array<i64: 1, 128>}, {pipeline_mode = #tpu.pipeline_mode<synchronous>, transform_indices = @transform_11, window_bounds = array<i64: 128, 128>}, {pipeline_mode = #tpu.pipeline_mode<synchronous>, transform_indices = @transform_12, window_bounds = array<i64: 1, 128>}, {pipeline_mode = #tpu.pipeline_mode<synchronous>, transform_indices = @transform_13, window_bounds = array<i64: 1, 128>}, {pipeline_mode = #tpu.pipeline_mode<synchronous>, transform_indices = @transform_14, window_bounds = array<i64: 1, 128>}, {transform_indices = @transform_15, window_bounds = array<i64: 1, 16, 128>}]} {
    %c0_i32 = arith.constant 0 : i32
    %0 = arith.cmpi eq, %arg2, %c0_i32 : i32
    %1 = arith.extui %0 : i1 to i32
    %c0_i32_0 = arith.constant 0 : i32
    %2 = arith.cmpi ne, %1, %c0_i32_0 : i32
    scf.if %2 {
      %cst_24 = arith.constant 0.000000e+00 : f32
      %40 = vector.broadcast %cst_24 : f32 to vector<16x128xf32>
      %c0_25 = arith.constant 0 : index
      %c0_26 = arith.constant 0 : index
      %41 = vector.load %arg19[%c0_25, %c0_26] : memref<16x128xf32, #tpu.memory_space<vmem>>, vector<16x128xf32>
      tpu.vector_store %arg19[%c0_25, %c0_26], %40 {strides = array<i32>} : memref<16x128xf32, #tpu.memory_space<vmem>>, vector<16x128xf32>,
      %cst_27 = arith.constant 0.000000e+00 : f32
      %42 = vector.broadcast %cst_27 : f32 to vector<16x128xf32>
      %c0_28 = arith.constant 0 : index
      %c0_29 = arith.constant 0 : index
      %43 = vector.load %arg20[%c0_28, %c0_29] : memref<16x128xf32, #tpu.memory_space<vmem>>, vector<16x128xf32>
      tpu.vector_store %arg20[%c0_28, %c0_29], %42 {strides = array<i32>} : memref<16x128xf32, #tpu.memory_space<vmem>>, vector<16x128xf32>,
    } else {
    }
    %c0 = arith.constant 0 : index
    %c0_1 = arith.constant 0 : index
    %c0_2 = arith.constant 0 : index
    %3 = vector.load %arg4[%c0, %c0_1, %c0_2] : memref<1x128x128xbf16, #tpu.memory_space<vmem>>, vector<1x128x128xbf16>
    %4 = vector.shape_cast %3 : vector<1x128x128xbf16> to vector<128x128xbf16>
    %c0_3 = arith.constant 0 : index
    %c0_4 = arith.constant 0 : index
    %c0_5 = arith.constant 0 : index
    %5 = vector.load %arg5[%c0_3, %c0_4, %c0_5] : memref<1x1x128xi32, #tpu.memory_space<vmem>>, vector<1x1x128xi32>
    %6 = vector.shape_cast %5 : vector<1x1x128xi32> to vector<1x128xi32>
    %c16_i32 = arith.constant 16 : i32
    %7 = arith.muli %arg0, %c16_i32 : i32
    %8 = vector.broadcast %7 : i32 to vector<1x128xi32>
    %9 = arith.subi %6, %8 : vector<1x128xi32>
    %10 = tpu.iota {dimensions = array<i32: 0>} : vector<16x128xi32>
    %11 = vector.broadcast %9 : vector<1x128xi32> to vector<16x128xi32>
    %12 = arith.cmpi eq, %10, %11 : vector<16x128xi32>
    %13 = arith.extui %12 : vector<16x128xi1> to vector<16x128xi32>
    %14 = arith.sitofp %13 : vector<16x128xi32> to vector<16x128xf32>
    %15 = arith.truncf %14 : vector<16x128xf32> to vector<16x128xbf16>
    %c0_6 = arith.constant 0 : index
    %c0_7 = arith.constant 0 : index
    %16 = vector.load %arg19[%c0_6, %c0_7] : memref<16x128xf32, #tpu.memory_space<vmem>>, vector<16x128xf32>
    %cst = arith.constant dense<0.000000e+00> : vector<16x128xf32>
    %17 = tpu.matmul %15, %4, %cst {dimension_numbers = #tpu.dot_dimension_numbers<[1], [0], [0], [1], [0, 0, 1, 1], [], []>} : vector<16x128xbf16>, vector<128x128xbf16>, vector<16x128xf32> -> vector<16x128xf32>
    %18 = arith.addf %16, %17 : vector<16x128xf32>
    %c0_8 = arith.constant 0 : index
    %c0_9 = arith.constant 0 : index
    %19 = vector.load %arg19[%c0_8, %c0_9] : memref<16x128xf32, #tpu.memory_space<vmem>>, vector<16x128xf32>
    tpu.vector_store %arg19[%c0_8, %c0_9], %18 {strides = array<i32>} : memref<16x128xf32, #tpu.memory_space<vmem>>, vector<16x128xf32>,
    %c0_10 = arith.constant 0 : index
    %c0_11 = arith.constant 0 : index
    %c0_12 = arith.constant 0 : index
    %20 = vector.load %arg6[%c0_10, %c0_11, %c0_12] : memref<1x128x128xbf16, #tpu.memory_space<vmem>>, vector<1x128x128xbf16>
    %21 = vector.shape_cast %20 : vector<1x128x128xbf16> to vector<128x128xbf16>
    %c0_13 = arith.constant 0 : index
    %c0_14 = arith.constant 0 : index
    %c0_15 = arith.constant 0 : index
    %22 = vector.load %arg7[%c0_13, %c0_14, %c0_15] : memref<1x1x128xi32, #tpu.memory_space<vmem>>, vector<1x1x128xi32>
    %23 = vector.shape_cast %22 : vector<1x1x128xi32> to vector<1x128xi32>
    %c16_i32_16 = arith.constant 16 : i32
    %24 = arith.muli %arg0, %c16_i32_16 : i32
    %25 = vector.broadcast %24 : i32 to vector<1x128xi32>
    %26 = arith.subi %23, %25 : vector<1x128xi32>
    %27 = tpu.iota {dimensions = array<i32: 0>} : vector<16x128xi32>
    %28 = vector.broadcast %26 : vector<1x128xi32> to vector<16x128xi32>
    %29 = arith.cmpi eq, %27, %28 : vector<16x128xi32>
    %30 = arith.extui %29 : vector<16x128xi1> to vector<16x128xi32>
    %31 = arith.sitofp %30 : vector<16x128xi32> to vector<16x128xf32>
    %32 = arith.truncf %31 : vector<16x128xf32> to vector<16x128xbf16>
    %c0_17 = arith.constant 0 : index
    %c0_18 = arith.constant 0 : index
    %33 = vector.load %arg20[%c0_17, %c0_18] : memref<16x128xf32, #tpu.memory_space<vmem>>, vector<16x128xf32>
    %cst_19 = arith.constant dense<0.000000e+00> : vector<16x128xf32>
    %34 = tpu.matmul %32, %21, %cst_19 {dimension_numbers = #tpu.dot_dimension_numbers<[1], [0], [0], [1], [0, 0, 1, 1], [], []>} : vector<16x128xbf16>, vector<128x128xbf16>, vector<16x128xf32> -> vector<16x128xf32>
    %35 = arith.addf %33, %34 : vector<16x128xf32>
    %c0_20 = arith.constant 0 : index
    %c0_21 = arith.constant 0 : index
    %36 = vector.load %arg20[%c0_20, %c0_21] : memref<16x128xf32, #tpu.memory_space<vmem>>, vector<16x128xf32>
    tpu.vector_store %arg20[%c0_20, %c0_21], %35 {strides = array<i32>} : memref<16x128xf32, #tpu.memory_space<vmem>>, vector<16x128xf32>,
    %c0_i32_22 = arith.constant 0 : i32
    %37 = arith.cmpi eq, %arg2, %c0_i32_22 : i32
    %38 = arith.extui %37 : i1 to i32
    %c0_i32_23 = arith.constant 0 : i32
    %39 = arith.cmpi ne, %38, %c0_i32_23 : i32
    scf.if %39 {
      %c0_24 = arith.constant 0 : index
      %c0_25 = arith.constant 0 : index
      %c0_26 = arith.constant 0 : index
      %40 = vector.load %arg3[%c0_24, %c0_25, %c0_26] : memref<1x16x128xf32, #tpu.memory_space<vmem>>, vector<1x16x128xf32>
      %41 = vector.shape_cast %40 : vector<1x16x128xf32> to vector<16x128xf32>
      %42 = arith.truncf %41 : vector<16x128xf32> to vector<16x128xbf16>
      %c0_27 = arith.constant 0 : index
      %c0_28 = arith.constant 0 : index
      %43 = vector.load %arg8[%c0_27, %c0_28] : memref<128x128xbf16, #tpu.memory_space<vmem>>, vector<128x128xbf16>
      %cst_29 = arith.constant dense<0.000000e+00> : vector<16x128xf32>
      %44 = tpu.matmul %42, %43, %cst_29 {dimension_numbers = #tpu.dot_dimension_numbers<[1], [0], [0], [1], [0, 0, 1, 1], [], []>} : vector<16x128xbf16>, vector<128x128xbf16>, vector<16x128xf32> -> vector<16x128xf32>
      %c0_30 = arith.constant 0 : index
      %c0_31 = arith.constant 0 : index
      %45 = vector.load %arg19[%c0_30, %c0_31] : memref<16x128xf32, #tpu.memory_space<vmem>>, vector<16x128xf32>
      %46 = vector.extract_strided_slice %45 {offsets = [0, 32], sizes = [16, 1], strides = [1, 1]} : vector<16x128xf32> to vector<16x1xf32>
      %cst_32 = arith.constant 1.000000e+00 : f32
      %47 = vector.broadcast %cst_32 : f32 to vector<16x1xf32>
      %48 = arith.maximumf %46, %47 : vector<16x1xf32>
      %49 = tpu.reciprocal %48 {approx = true} : vector<16x1xf32> -> vector<16x1xf32>
      %50 = vector.broadcast %49 : vector<16x1xf32> to vector<16x128xf32>
      %51 = arith.mulf %45, %50 : vector<16x128xf32>
      %52 = arith.truncf %51 : vector<16x128xf32> to vector<16x128xbf16>
      %c0_33 = arith.constant 0 : index
      %c0_34 = arith.constant 0 : index
      %53 = vector.load %arg9[%c0_33, %c0_34] : memref<128x128xbf16, #tpu.memory_space<vmem>>, vector<128x128xbf16>
      %cst_35 = arith.constant dense<0.000000e+00> : vector<16x128xf32>
      %54 = tpu.matmul %52, %53, %cst_35 {dimension_numbers = #tpu.dot_dimension_numbers<[1], [0], [0], [1], [0, 0, 1, 1], [], []>} : vector<16x128xbf16>, vector<128x128xbf16>, vector<16x128xf32> -> vector<16x128xf32>
      %55 = arith.addf %44, %54 : vector<16x128xf32>
      %c0_36 = arith.constant 0 : index
      %c0_37 = arith.constant 0 : index
      %56 = vector.load %arg20[%c0_36, %c0_37] : memref<16x128xf32, #tpu.memory_space<vmem>>, vector<16x128xf32>
      %57 = vector.extract_strided_slice %56 {offsets = [0, 16], sizes = [16, 1], strides = [1, 1]} : vector<16x128xf32> to vector<16x1xf32>
      %cst_38 = arith.constant 1.000000e+00 : f32
      %58 = vector.broadcast %cst_38 : f32 to vector<16x1xf32>
      %59 = arith.maximumf %57, %58 : vector<16x1xf32>
      %60 = tpu.reciprocal %59 {approx = true} : vector<16x1xf32> -> vector<16x1xf32>
      %61 = vector.broadcast %60 : vector<16x1xf32> to vector<16x128xf32>
      %62 = arith.mulf %56, %61 : vector<16x128xf32>
      %63 = arith.truncf %62 : vector<16x128xf32> to vector<16x128xbf16>
      %c0_39 = arith.constant 0 : index
      %c0_40 = arith.constant 0 : index
      %64 = vector.load %arg10[%c0_39, %c0_40] : memref<128x128xbf16, #tpu.memory_space<vmem>>, vector<128x128xbf16>
      %cst_41 = arith.constant dense<0.000000e+00> : vector<16x128xf32>
      %65 = tpu.matmul %63, %64, %cst_41 {dimension_numbers = #tpu.dot_dimension_numbers<[1], [0], [0], [1], [0, 0, 1, 1], [], []>} : vector<16x128xbf16>, vector<128x128xbf16>, vector<16x128xf32> -> vector<16x128xf32>
      %66 = arith.addf %55, %65 : vector<16x128xf32>
      %c0_42 = arith.constant 0 : index
      %c0_43 = arith.constant 0 : index
      %67 = vector.load %arg11[%c0_42, %c0_43] : memref<1x128xf32, #tpu.memory_space<vmem>>, vector<1x128xf32>
      %68 = vector.broadcast %67 : vector<1x128xf32> to vector<16x128xf32>
      %69 = arith.addf %66, %68 : vector<16x128xf32>
      %cst_44 = arith.constant 0.000000e+00 : f32
      %70 = vector.broadcast %cst_44 : f32 to vector<16x128xf32>
      %71 = arith.maximumf %69, %70 : vector<16x128xf32>
      %72 = arith.truncf %71 : vector<16x128xf32> to vector<16x128xbf16>
      %c0_45 = arith.constant 0 : index
      %c0_46 = arith.constant 0 : index
      %73 = vector.load %arg12[%c0_45, %c0_46] : memref<128x128xbf16, #tpu.memory_space<vmem>>, vector<128x128xbf16>
      %cst_47 = arith.constant dense<0.000000e+00> : vector<16x128xf32>
      %74 = tpu.matmul %72, %73, %cst_47 {dimension_numbers = #tpu.dot_dimension_numbers<[1], [0], [0], [1], [0, 0, 1, 1], [], []>} : vector<16x128xbf16>, vector<128x128xbf16>, vector<16x128xf32> -> vector<16x128xf32>
      %c0_48 = arith.constant 0 : index
      %c0_49 = arith.constant 0 : index
      %75 = vector.load %arg13[%c0_48, %c0_49] : memref<1x128xf32, #tpu.memory_space<vmem>>, vector<1x128xf32>
      %76 = vector.broadcast %75 : vector<1x128xf32> to vector<16x128xf32>
      %77 = arith.addf %74, %76 : vector<16x128xf32>
      %cst_50 = arith.constant 0.000000e+00 : f32
      %78 = vector.broadcast %cst_50 : f32 to vector<16x128xf32>
      %79 = arith.maximumf %77, %78 : vector<16x128xf32>
      %80 = arith.truncf %79 : vector<16x128xf32> to vector<16x128xbf16>
      %c0_51 = arith.constant 0 : index
      %c0_52 = arith.constant 0 : index
      %81 = vector.load %arg14[%c0_51, %c0_52] : memref<128x128xbf16, #tpu.memory_space<vmem>>, vector<128x128xbf16>
      %cst_53 = arith.constant dense<0.000000e+00> : vector<16x128xf32>
      %82 = tpu.matmul %80, %81, %cst_53 {dimension_numbers = #tpu.dot_dimension_numbers<[1], [0], [0], [1], [0, 0, 1, 1], [], []>} : vector<16x128xbf16>, vector<128x128xbf16>, vector<16x128xf32> -> vector<16x128xf32>
      %c0_54 = arith.constant 0 : index
      %c0_55 = arith.constant 0 : index
      %83 = vector.load %arg15[%c0_54, %c0_55] : memref<1x128xf32, #tpu.memory_space<vmem>>, vector<1x128xf32>
      %84 = vector.broadcast %83 : vector<1x128xf32> to vector<16x128xf32>
      %85 = arith.addf %82, %84 : vector<16x128xf32>
      %86 = tpu.iota {dimensions = array<i32: 1>} : vector<1x128xi32>
      %c32_i32 = arith.constant 32 : i32
      %87 = vector.broadcast %c32_i32 : i32 to vector<1x128xi32>
      %88 = arith.cmpi slt, %86, %87 : vector<1x128xi32>
      %89 = arith.extui %88 : vector<1x128xi1> to vector<1x128xi32>
      %90 = arith.sitofp %89 : vector<1x128xi32> to vector<1x128xf32>
      %91 = vector.broadcast %90 : vector<1x128xf32> to vector<16x128xf32>
      %92 = arith.mulf %85, %91 : vector<16x128xf32>
      %cst_56 = arith.constant dense<0.000000e+00> : vector<16xf32>
      %93 = vector.multi_reduction <add>, %92, %cst_56 [1] : vector<16x128xf32> to vector<16xf32>
      %94 = vector.shape_cast %93 : vector<16xf32> to vector<16x1xf32>
      %cst_57 = arith.constant 3.125000e-02 : f32
      %95 = vector.broadcast %cst_57 : f32 to vector<16x1xf32>
      %96 = arith.mulf %94, %95 : vector<16x1xf32>
      %97 = vector.broadcast %96 : vector<16x1xf32> to vector<16x128xf32>
      %98 = arith.subf %85, %97 : vector<16x128xf32>
      %99 = vector.broadcast %90 : vector<1x128xf32> to vector<16x128xf32>
      %100 = arith.mulf %98, %99 : vector<16x128xf32>
      %101 = arith.mulf %100, %100 : vector<16x128xf32>
      %cst_58 = arith.constant dense<0.000000e+00> : vector<16xf32>
      %102 = vector.multi_reduction <add>, %101, %cst_58 [1] : vector<16x128xf32> to vector<16xf32>
      %103 = vector.shape_cast %102 : vector<16xf32> to vector<16x1xf32>
      %cst_59 = arith.constant 3.125000e-02 : f32
      %104 = vector.broadcast %cst_59 : f32 to vector<16x1xf32>
      %105 = arith.mulf %103, %104 : vector<16x1xf32>
      %cst_60 = arith.constant 9.99999974E-6 : f32
      %106 = vector.broadcast %cst_60 : f32 to vector<16x1xf32>
      %107 = arith.addf %105, %106 : vector<16x1xf32>
      %108 = math.rsqrt %107 : vector<16x1xf32>
      %109 = vector.broadcast %108 : vector<16x1xf32> to vector<16x128xf32>
      %110 = arith.mulf %100, %109 : vector<16x128xf32>
      %c0_61 = arith.constant 0 : index
      %c0_62 = arith.constant 0 : index
      %111 = vector.load %arg16[%c0_61, %c0_62] : memref<1x128xf32, #tpu.memory_space<vmem>>, vector<1x128xf32>
      %112 = vector.broadcast %111 : vector<1x128xf32> to vector<16x128xf32>
      %113 = arith.mulf %110, %112 : vector<16x128xf32>
      %c0_63 = arith.constant 0 : index
      %c0_64 = arith.constant 0 : index
      %114 = vector.load %arg17[%c0_63, %c0_64] : memref<1x128xf32, #tpu.memory_space<vmem>>, vector<1x128xf32>
      %115 = vector.broadcast %114 : vector<1x128xf32> to vector<16x128xf32>
      %116 = arith.addf %113, %115 : vector<16x128xf32>
      %117 = arith.addf %41, %116 : vector<16x128xf32>
      %c0_65 = arith.constant 0 : index
      %c0_66 = arith.constant 0 : index
      %c0_67 = arith.constant 0 : index
      %118 = vector.load %arg18[%c0_65, %c0_66, %c0_67] : memref<1x16x128xf32, #tpu.memory_space<vmem>>, vector<1x16x128xf32>
      %119 = vector.shape_cast %118 : vector<1x16x128xf32> to vector<16x128xf32>
      %120 = vector.shape_cast %117 : vector<16x128xf32> to vector<1x16x128xf32>
      tpu.vector_store %arg18[%c0_65, %c0_66, %c0_67], %120 {strides = array<i32>} : memref<1x16x128xf32, #tpu.memory_space<vmem>>, vector<1x16x128xf32>,
    } else {
    }
    return
  }
  func.func @transform_0(%arg0: i32, %arg1: i32, %arg2: i32) -> (i32, i32, i32) {
    %c0_i32 = arith.constant 0 : i32
    %c0_i32_0 = arith.constant 0 : i32
    return %arg1, %arg0, %c0_i32 : i32, i32, i32
  }
  func.func @transform_1(%arg0: i32, %arg1: i32, %arg2: i32) -> (i32, i32, i32) {
    %c0_i32 = arith.constant 0 : i32
    %c0_i32_0 = arith.constant 0 : i32
    return %arg1, %arg2, %c0_i32 : i32, i32, i32
  }
  func.func @transform_2(%arg0: i32, %arg1: i32, %arg2: i32) -> (i32, i32, i32) {
    %c0_i32 = arith.constant 0 : i32
    %c0_i32_0 = arith.constant 0 : i32
    return %arg1, %c0_i32, %arg2 : i32, i32, i32
  }
  func.func @transform_3(%arg0: i32, %arg1: i32, %arg2: i32) -> (i32, i32, i32) {
    %c0_i32 = arith.constant 0 : i32
    %c0_i32_0 = arith.constant 0 : i32
    return %arg1, %arg2, %c0_i32 : i32, i32, i32
  }
  func.func @transform_4(%arg0: i32, %arg1: i32, %arg2: i32) -> (i32, i32, i32) {
    %c0_i32 = arith.constant 0 : i32
    %c0_i32_0 = arith.constant 0 : i32
    return %arg1, %c0_i32, %arg2 : i32, i32, i32
  }
  func.func @transform_5(%arg0: i32, %arg1: i32, %arg2: i32) -> (i32, i32) {
    %c0_i32 = arith.constant 0 : i32
    %c0_i32_0 = arith.constant 0 : i32
    %c0_i32_1 = arith.constant 0 : i32
    return %c0_i32, %c0_i32_0 : i32, i32
  }
  func.func @transform_6(%arg0: i32, %arg1: i32, %arg2: i32) -> (i32, i32) {
    %c0_i32 = arith.constant 0 : i32
    %c0_i32_0 = arith.constant 0 : i32
    %c0_i32_1 = arith.constant 0 : i32
    return %c0_i32, %c0_i32_0 : i32, i32
  }
  func.func @transform_7(%arg0: i32, %arg1: i32, %arg2: i32) -> (i32, i32) {
    %c0_i32 = arith.constant 0 : i32
    %c0_i32_0 = arith.constant 0 : i32
    %c0_i32_1 = arith.constant 0 : i32
    return %c0_i32, %c0_i32_0 : i32, i32
  }
  func.func @transform_8(%arg0: i32, %arg1: i32, %arg2: i32) -> (i32, i32) {
    %c0_i32 = arith.constant 0 : i32
    %c0_i32_0 = arith.constant 0 : i32
    %c0_i32_1 = arith.constant 0 : i32
    return %c0_i32, %c0_i32_0 : i32, i32
  }
  func.func @transform_9(%arg0: i32, %arg1: i32, %arg2: i32) -> (i32, i32) {
    %c0_i32 = arith.constant 0 : i32
    %c0_i32_0 = arith.constant 0 : i32
    %c0_i32_1 = arith.constant 0 : i32
    return %c0_i32, %c0_i32_0 : i32, i32
  }
  func.func @transform_10(%arg0: i32, %arg1: i32, %arg2: i32) -> (i32, i32) {
    %c0_i32 = arith.constant 0 : i32
    %c0_i32_0 = arith.constant 0 : i32
    %c0_i32_1 = arith.constant 0 : i32
    return %c0_i32, %c0_i32_0 : i32, i32
  }
  func.func @transform_11(%arg0: i32, %arg1: i32, %arg2: i32) -> (i32, i32) {
    %c0_i32 = arith.constant 0 : i32
    %c0_i32_0 = arith.constant 0 : i32
    %c0_i32_1 = arith.constant 0 : i32
    return %c0_i32, %c0_i32_0 : i32, i32
  }
  func.func @transform_12(%arg0: i32, %arg1: i32, %arg2: i32) -> (i32, i32) {
    %c0_i32 = arith.constant 0 : i32
    %c0_i32_0 = arith.constant 0 : i32
    %c0_i32_1 = arith.constant 0 : i32
    return %c0_i32, %c0_i32_0 : i32, i32
  }
  func.func @transform_13(%arg0: i32, %arg1: i32, %arg2: i32) -> (i32, i32) {
    %c0_i32 = arith.constant 0 : i32
    %c0_i32_0 = arith.constant 0 : i32
    %c0_i32_1 = arith.constant 0 : i32
    return %c0_i32, %c0_i32_0 : i32, i32
  }
  func.func @transform_14(%arg0: i32, %arg1: i32, %arg2: i32) -> (i32, i32) {
    %c0_i32 = arith.constant 0 : i32
    %c0_i32_0 = arith.constant 0 : i32
    %c0_i32_1 = arith.constant 0 : i32
    return %c0_i32, %c0_i32_0 : i32, i32
  }
  func.func @transform_15(%arg0: i32, %arg1: i32, %arg2: i32) -> (i32, i32, i32) {
    %c0_i32 = arith.constant 0 : i32
    %c0_i32_0 = arith.constant 0 : i32
    return %arg1, %arg0, %c0_i32 : i32, i32, i32
  }
}

</mosaic_0001>

<llo_original>
// kernel: tpu_custom_call.1
$region0: #{tpu_custom_call.1}
  #allocation0 [shape = 'u32[]', space=smem, size = 0x4, offset = 0x4, fixed_abs, tag = 'smem constant byte address 0x4 - core index']
  #allocation1 [shape = 'u32[144,128]{1,0:T(1,128)}', space=vmem, size = 0x12000, scoped, tag = 'internal scratch']
  #allocation2 [shape = 'f32[16,128]{1,0:T(8,128)}', space=vmem, size = 0x2000, scoped, tag = 'scratch operand']
  #allocation3 [shape = 'f32[16,128]{1,0:T(8,128)}', space=vmem, size = 0x2000, scoped, tag = 'scratch operand']
  %s0 = inlined_call_operand.hbm [shape: f32[2,16,128], index: 0, kind: input, shape index: {}]
  %s1 = inlined_call_operand.hbm [shape: bf16[2,128,128], index: 1, kind: input, shape index: {}]
  %s2 = inlined_call_operand.vmem [shape: s32[2,1,128], index: 2, kind: input, shape index: {}]
  %s3 = inlined_call_operand.hbm [shape: bf16[2,128,128], index: 3, kind: input, shape index: {}]
  %s4 = inlined_call_operand.vmem [shape: s32[2,1,128], index: 4, kind: input, shape index: {}]
  %s5 = inlined_call_operand.hbm [shape: bf16[128,128], index: 5, kind: input, shape index: {}]
  %s6 = inlined_call_operand.hbm [shape: bf16[128,128], index: 6, kind: input, shape index: {}]
  %s7 = inlined_call_operand.hbm [shape: bf16[128,128], index: 7, kind: input, shape index: {}]
  %s8 = inlined_call_operand.vmem [shape: f32[1,128], index: 8, kind: input, shape index: {}]
  %s9 = inlined_call_operand.hbm [shape: bf16[128,128], index: 9, kind: input, shape index: {}]
  %s10 = inlined_call_operand.vmem [shape: f32[1,128], index: 10, kind: input, shape index: {}]
  %s11 = inlined_call_operand.hbm [shape: bf16[128,128], index: 11, kind: input, shape index: {}]
  %s12 = inlined_call_operand.vmem [shape: f32[1,128], index: 12, kind: input, shape index: {}]
  %s13 = inlined_call_operand.vmem [shape: f32[1,128], index: 13, kind: input, shape index: {}]
  %s14 = inlined_call_operand.vmem [shape: f32[1,128], index: 14, kind: input, shape index: {}]
  %s15 = inlined_call_operand.hbm [shape: f32[2,16,128], index: 15, kind: output, shape index: {}]
  %s16 = sld [smem:[#allocation0]]
  $region133: #{tpu_custom_call.1} parent=0
    _
  %s18 = ssub.s32 1, %s16
  %s19 = scalar_select 0, %s18, %s16
  $region1: #{tpu_custom_call.1} parent=0
    #allocation4 [shape = 'u8[16384]{0}', space=vmem, size = 0x4000, scoped, tag = 'input window, operand 0']
    #allocation5 [shape = 's32[2]{0}', space=sflag, size = 0x8, scoped, tag = 'scoped memory for tpu_custom_call.1']
    #allocation6 [shape = 's32[2]{0}', space=sflag, size = 0x8, scoped, tag = 'scoped memory for tpu_custom_call.1']
    #allocation7 [shape = 'u8[65536]{0}', space=vmem, size = 0x10000, scoped, tag = 'input window, operand 1']
    #allocation8 [shape = 's32[2]{0}', space=sflag, size = 0x8, scoped, tag = 'scoped memory for tpu_custom_call.1']
    #allocation9 [shape = 'u8[65536]{0}', space=vmem, size = 0x10000, scoped, tag = 'input window, operand 3']
    #allocation10 [shape = 'u8[32768]{0}', space=vmem, size = 0x8000, scoped, tag = 'input window, operand 5, single buffered']
    #allocation11 [shape = 's32[1]{0}', space=sflag, size = 0x4, scoped, tag = 'scoped memory for tpu_custom_call.1']
    #allocation12 [shape = 'u8[32768]{0}', space=vmem, size = 0x8000, scoped, tag = 'input window, operand 6, single buffered']
    #allocation13 [shape = 'u8[32768]{0}', space=vmem, size = 0x8000, scoped, tag = 'input window, operand 7, single buffered']
    #allocation14 [shape = 's32[1]{0}', space=sflag, size = 0x4, scoped, tag = 'scoped memory for tpu_custom_call.1']
    #allocation15 [shape = 'u8[32768]{0}', space=vmem, size = 0x8000, scoped, tag = 'input window, operand 9, single buffered']
    #allocation16 [shape = 'u8[32768]{0}', space=vmem, size = 0x8000, scoped, tag = 'input window, operand 11, single buffered']
    #allocation17 [shape = 's32[1]{0}', space=sflag, size = 0x4, scoped, tag = 'scoped memory for tpu_custom_call.1']
    #allocation18 [shape = 'u8[16384]{0}', space=vmem, size = 0x4000, scoped, tag = 'output window, operand 0']
    %20 = vsyncpa [#allocation5], 0
    %s21 = scalar_lea.sflag [#allocation5], 1
    %22 = vsyncpa %s21, 0
    %23 = vsyncpa [#allocation8], 0
    %s24 = scalar_lea.sflag [#allocation8], 1
    %25 = vsyncpa %s24, 0
    %26 = vsyncpa [#allocation11], 0
    %27 = vsyncpa [#allocation14], 0
    %28 = vsyncpa [#allocation17], 0
    %29 = vsyncpa [#allocation6], 0
    %s30 = scalar_lea.sflag [#allocation6], 1
    %31 = vsyncpa %s30, 0
    loop: start=0, step=1, limit=4
    $region2: #{tpu_custom_call.1} parent=1 // loop_pre_header
      _
    $region3: #{tpu_custom_call.1} parent=1 // loop_header
      %s33 = sphi 0, %s37
      %p34 = scmp.ge.s32.totalorder %s33, 4
      %s40 = sphi 0, %s59
      %s41 = sphi 0, %s55
      %s42 = sphi 0, %s51
      %s43 = sphi 0, %s40
      %s44 = sphi 0, %s41
      %s45 = sphi 0, %s42
      %s46 = sphi 0, %s43
      %s47 = sphi 0, %s44
      %s48 = sphi 0, %s45
      %s64 = sphi 0, %s66
      %s67 = sphi 0, %s64
      %s68 = sphi 0, %s67
      %s84 = sphi 0, %s68
      %s92 = sphi 0, %s94
      %s95 = sphi 0, %s92
      %s96 = sphi 0, %s95
      %s112 = sphi 0, %s96
      %s120 = sphi 0, %s122
      %s123 = sphi 0, %s120
      %s124 = sphi 0, %s123
      %s140 = sphi 0, %s124
      %s148 = sphi 0, %s150
      %s151 = sphi 0, %s148
      %s152 = sphi 0, %s151
      %s168 = sphi 0, %s152
      %s176 = sphi 0, %s178
      %s179 = sphi 0, %s176
      %s180 = sphi 0, %s179
      %s196 = sphi 0, %s180
      %s200 = sphi 0, %s200
      %s202 = sphi 0, %s200
      %s203 = sphi 0, %s202
      %s217 = sphi 0, %s203
      %s221 = sphi 0, %s221
      %s223 = sphi 0, %s221
      %s224 = sphi 0, %s223
      %s238 = sphi 0, %s224
      %s242 = sphi 0, %s242
      %s244 = sphi 0, %s242
      %s245 = sphi 0, %s244
      %s259 = sphi 0, %s245
      %s263 = sphi 0, %s263
      %s265 = sphi 0, %s263
      %s266 = sphi 0, %s265
      %s280 = sphi 0, %s266
      %s284 = sphi 0, %s284
      %s286 = sphi 0, %s284
      %s287 = sphi 0, %s286
      %s301 = sphi 0, %s287
      %s305 = sphi 0, %s305
      %s307 = sphi 0, %s305
      %s308 = sphi 0, %s307
      %s322 = sphi 0, %s308
      %s326 = sphi 0, %s326
      %s328 = sphi 0, %s326
      %s329 = sphi 0, %s328
      %s343 = sphi 0, %s329
      %s347 = sphi 0, %s347
      %s349 = sphi 0, %s347
      %s350 = sphi 0, %s349
      %s364 = sphi 0, %s350
      %s368 = sphi 0, %s368
      %s370 = sphi 0, %s368
      %s371 = sphi 0, %s370
      %s385 = sphi 0, %s371
      %s389 = sphi 0, %s389
      %s391 = sphi 0, %s389
      %s392 = sphi 0, %s391
      %s406 = sphi 0, %s392
      %s414 = sphi 0, %s416
      %s417 = sphi 0, %s414
      %s418 = sphi 0, %s417
      %s434 = sphi 0, %s418
    $region4: #{tpu_custom_call.1} parent=1 // loop_header_branch
      %36 = sbr.rel (%p34) target = $region8
    $region5: #{tpu_custom_call.1} parent=1 // loop_body
      %s38 = ssub.s32 %s33, 1
      %s39 = ssub.s32 %s33, 2
      %s49 = sadd.s32 1, %s42
      %p50 = scmp.ge.s32.totalorder %s49, 1
      %s51 = scalar_select %p50, 0, %s49
      %s52 = sadd.s32 1, %s41
      %s53 = scalar_select %p50, %s52, %s41
      %p54 = scmp.ge.s32.totalorder %s53, 2
      %s55 = scalar_select %p54, 0, %s53
      %s56 = sadd.s32 1, %s40
      %s57 = scalar_select %p54, %s56, %s40
      %p58 = scmp.ge.s32.totalorder %s57, 1
      %s59 = scalar_select %p58, 0, %s57
      %s60 = ssub.s32 %s41, %s55
      %s61 = ssub.s32 %s40, %s59
      %s62 = sor.u32 %s60, %s61
      %p63 = scmp.eq.s32.totalorder %s62, 0
      %s65 = sadd.s32 %s64, 1
      %s66 = scalar_select %p63, %s64, %s65
      %p69 = pneg %p63
      %p70 = scmp.eq.s32.totalorder %s33, 1
      %p71 = por %p69, %p70
      %p72 = scmp.ne.s32.totalorder %s64, %s67
      %p73 = scmp.eq.s32.totalorder %s33, 0
      %p74 = por %p72, %p73
      %p75 = scmp.ne.s32.totalorder %s64, %s67
      %p76 = scmp.eq.s32.totalorder %s38, 1
      %p77 = por %p75, %p76
      %p78 = scmp.ne.s32.totalorder %s67, %s68
      %p79 = scmp.eq.s32.totalorder %s38, 0
      %p80 = por %p78, %p79
      %p81 = scmp.ne.s32.totalorder %s67, %s68
      %p82 = scmp.eq.s32.totalorder %s39, 1
      %p83 = por %p81, %p82
      %p85 = scmp.ne.s32.totalorder %s68, %s84
      %p86 = scmp.eq.s32.totalorder %s39, 0
      %p87 = por %p85, %p86
      %s88 = ssub.s32 %s41, %s55
      %s89 = ssub.s32 %s42, %s51
      %s90 = sor.u32 %s88, %s89
      %p91 = scmp.eq.s32.totalorder %s90, 0
      %s93 = sadd.s32 %s92, 1
      %s94 = scalar_select %p91, %s92, %s93
      %p97 = pneg %p91
      %p98 = scmp.eq.s32.totalorder %s33, 1
      %p99 = por %p97, %p98
      %p100 = scmp.ne.s32.totalorder %s92, %s95
      %p101 = scmp.eq.s32.totalorder %s33, 0
      %p102 = por %p100, %p101
      %p103 = scmp.ne.s32.totalorder %s92, %s95
      %p104 = scmp.eq.s32.totalorder %s38, 1
      %p105 = por %p103, %p104
      %p106 = scmp.ne.s32.totalorder %s95, %s96
      %p107 = scmp.eq.s32.totalorder %s38, 0
      %p108 = por %p106, %p107
      %p109 = scmp.ne.s32.totalorder %s95, %s96
      %p110 = scmp.eq.s32.totalorder %s39, 1
      %p111 = por %p109, %p110
      %p113 = scmp.ne.s32.totalorder %s96, %s112
      %p114 = scmp.eq.s32.totalorder %s39, 0
      %p115 = por %p113, %p114
      %s116 = ssub.s32 %s41, %s55
      %s117 = ssub.s32 %s42, %s51
      %s118 = sor.u32 %s116, %s117
      %p119 = scmp.eq.s32.totalorder %s118, 0
      %s121 = sadd.s32 %s120, 1
      %s122 = scalar_select %p119, %s120, %s121
      %p125 = pneg %p119
      %p126 = scmp.eq.s32.totalorder %s33, 1
      %p127 = por %p125, %p126
      %p128 = scmp.ne.s32.totalorder %s120, %s123
      %p129 = scmp.eq.s32.totalorder %s33, 0
      %p130 = por %p128, %p129
      %p131 = scmp.ne.s32.totalorder %s120, %s123
      %p132 = scmp.eq.s32.totalorder %s38, 1
      %p133 = por %p131, %p132
      %p134 = scmp.ne.s32.totalorder %s123, %s124
      %p135 = scmp.eq.s32.totalorder %s38, 0
      %p136 = por %p134, %p135
      %p137 = scmp.ne.s32.totalorder %s123, %s124
      %p138 = scmp.eq.s32.totalorder %s39, 1
      %p139 = por %p137, %p138
      %p141 = scmp.ne.s32.totalorder %s124, %s140
      %p142 = scmp.eq.s32.totalorder %s39, 0
      %p143 = por %p141, %p142
      %s144 = ssub.s32 %s41, %s55
      %s145 = ssub.s32 %s42, %s51
      %s146 = sor.u32 %s144, %s145
      %p147 = scmp.eq.s32.totalorder %s146, 0
      %s149 = sadd.s32 %s148, 1
      %s150 = scalar_select %p147, %s148, %s149
      %p153 = pneg %p147
      %p154 = scmp.eq.s32.totalorder %s33, 1
      %p155 = por %p153, %p154
      %p156 = scmp.ne.s32.totalorder %s148, %s151
      %p157 = scmp.eq.s32.totalorder %s33, 0
      %p158 = por %p156, %p157
      %p159 = scmp.ne.s32.totalorder %s148, %s151
      %p160 = scmp.eq.s32.totalorder %s38, 1
      %p161 = por %p159, %p160
      %p162 = scmp.ne.s32.totalorder %s151, %s152
      %p163 = scmp.eq.s32.totalorder %s38, 0
      %p164 = por %p162, %p163
      %p165 = scmp.ne.s32.totalorder %s151, %s152
      %p166 = scmp.eq.s32.totalorder %s39, 1
      %p167 = por %p165, %p166
      %p169 = scmp.ne.s32.totalorder %s152, %s168
      %p170 = scmp.eq.s32.totalorder %s39, 0
      %p171 = por %p169, %p170
      %s172 = ssub.s32 %s41, %s55
      %s173 = ssub.s32 %s42, %s51
      %s174 = sor.u32 %s172, %s173
      %p175 = scmp.eq.s32.totalorder %s174, 0
      %s177 = sadd.s32 %s176, 1
      %s178 = scalar_select %p175, %s176, %s177
      %p181 = pneg %p175
      %p182 = scmp.eq.s32.totalorder %s33, 1
      %p183 = por %p181, %p182
      %p184 = scmp.ne.s32.totalorder %s176, %s179
      %p185 = scmp.eq.s32.totalorder %s33, 0
      %p186 = por %p184, %p185
      %p187 = scmp.ne.s32.totalorder %s176, %s179
      %p188 = scmp.eq.s32.totalorder %s38, 1
      %p189 = por %p187, %p188
      %p190 = scmp.ne.s32.totalorder %s179, %s180
      %p191 = scmp.eq.s32.totalorder %s38, 0
      %p192 = por %p190, %p191
      %p193 = scmp.ne.s32.totalorder %s179, %s180
      %p194 = scmp.eq.s32.totalorder %s39, 1
      %p195 = por %p193, %p194
      %p197 = scmp.ne.s32.totalorder %s180, %s196
      %p198 = scmp.eq.s32.totalorder %s39, 0
      %p199 = por %p197, %p198
      %s201 = sadd.s32 %s200, 1
      %p204 = scmp.eq.s32.totalorder %s33, 1
      %p205 = scmp.ne.s32.totalorder %s200, %s202
      %p206 = scmp.eq.s32.totalorder %s33, 0
      %p207 = por %p205, %p206
      %p208 = scmp.ne.s32.totalorder %s200, %s202
      %p209 = scmp.eq.s32.totalorder %s38, 1
      %p210 = por %p208, %p209
      %p211 = scmp.ne.s32.totalorder %s202, %s203
      %p212 = scmp.eq.s32.totalorder %s38, 0
      %p213 = por %p211, %p212
      %p214 = scmp.ne.s32.totalorder %s202, %s203
      %p215 = scmp.eq.s32.totalorder %s39, 1
      %p216 = por %p214, %p215
      %p218 = scmp.ne.s32.totalorder %s203, %s217
      %p219 = scmp.eq.s32.totalorder %s39, 0
      %p220 = por %p218, %p219
      %s222 = sadd.s32 %s221, 1
      %p225 = scmp.eq.s32.totalorder %s33, 1
      %p226 = scmp.ne.s32.totalorder %s221, %s223
      %p227 = scmp.eq.s32.totalorder %s33, 0
      %p228 = por %p226, %p227
      %p229 = scmp.ne.s32.totalorder %s221, %s223
      %p230 = scmp.eq.s32.totalorder %s38, 1
      %p231 = por %p229, %p230
      %p232 = scmp.ne.s32.totalorder %s223, %s224
      %p233 = scmp.eq.s32.totalorder %s38, 0
      %p234 = por %p232, %p233
      %p235 = scmp.ne.s32.totalorder %s223, %s224
      %p236 = scmp.eq.s32.totalorder %s39, 1
      %p237 = por %p235, %p236
      %p239 = scmp.ne.s32.totalorder %s224, %s238
      %p240 = scmp.eq.s32.totalorder %s39, 0
      %p241 = por %p239, %p240
      %s243 = sadd.s32 %s242, 1
      %p246 = scmp.eq.s32.totalorder %s33, 1
      %p247 = scmp.ne.s32.totalorder %s242, %s244
      %p248 = scmp.eq.s32.totalorder %s33, 0
      %p249 = por %p247, %p248
      %p250 = scmp.ne.s32.totalorder %s242, %s244
      %p251 = scmp.eq.s32.totalorder %s38, 1
      %p252 = por %p250, %p251
      %p253 = scmp.ne.s32.totalorder %s244, %s245
      %p254 = scmp.eq.s32.totalorder %s38, 0
      %p255 = por %p253, %p254
      %p256 = scmp.ne.s32.totalorder %s244, %s245
      %p257 = scmp.eq.s32.totalorder %s39, 1
      %p258 = por %p256, %p257
      %p260 = scmp.ne.s32.totalorder %s245, %s259
      %p261 = scmp.eq.s32.totalorder %s39, 0
      %p262 = por %p260, %p261
      %s264 = sadd.s32 %s263, 1
      %p267 = scmp.eq.s32.totalorder %s33, 1
      %p268 = scmp.ne.s32.totalorder %s263, %s265
      %p269 = scmp.eq.s32.totalorder %s33, 0
      %p270 = por %p268, %p269
      %p271 = scmp.ne.s32.totalorder %s263, %s265
      %p272 = scmp.eq.s32.totalorder %s38, 1
      %p273 = por %p271, %p272
      %p274 = scmp.ne.s32.totalorder %s265, %s266
      %p275 = scmp.eq.s32.totalorder %s38, 0
      %p276 = por %p274, %p275
      %p277 = scmp.ne.s32.totalorder %s265, %s266
      %p278 = scmp.eq.s32.totalorder %s39, 1
      %p279 = por %p277, %p278
      %p281 = scmp.ne.s32.totalorder %s266, %s280
      %p282 = scmp.eq.s32.totalorder %s39, 0
      %p283 = por %p281, %p282
      %s285 = sadd.s32 %s284, 1
      %p288 = scmp.eq.s32.totalorder %s33, 1
      %p289 = scmp.ne.s32.totalorder %s284, %s286
      %p290 = scmp.eq.s32.totalorder %s33, 0
      %p291 = por %p289, %p290
      %p292 = scmp.ne.s32.totalorder %s284, %s286
      %p293 = scmp.eq.s32.totalorder %s38, 1
      %p294 = por %p292, %p293
      %p295 = scmp.ne.s32.totalorder %s286, %s287
      %p296 = scmp.eq.s32.totalorder %s38, 0
      %p297 = por %p295, %p296
      %p298 = scmp.ne.s32.totalorder %s286, %s287
      %p299 = scmp.eq.s32.totalorder %s39, 1
      %p300 = por %p298, %p299
      %p302 = scmp.ne.s32.totalorder %s287, %s301
      %p303 = scmp.eq.s32.totalorder %s39, 0
      %p304 = por %p302, %p303
      %s306 = sadd.s32 %s305, 1
      %p309 = scmp.eq.s32.totalorder %s33, 1
      %p310 = scmp.ne.s32.totalorder %s305, %s307
      %p311 = scmp.eq.s32.totalorder %s33, 0
      %p312 = por %p310, %p311
      %p313 = scmp.ne.s32.totalorder %s305, %s307
      %p314 = scmp.eq.s32.totalorder %s38, 1
      %p315 = por %p313, %p314
      %p316 = scmp.ne.s32.totalorder %s307, %s308
      %p317 = scmp.eq.s32.totalorder %s38, 0
      %p318 = por %p316, %p317
      %p319 = scmp.ne.s32.totalorder %s307, %s308
      %p320 = scmp.eq.s32.totalorder %s39, 1
      %p321 = por %p319, %p320
      %p323 = scmp.ne.s32.totalorder %s308, %s322
      %p324 = scmp.eq.s32.totalorder %s39, 0
      %p325 = por %p323, %p324
      %s327 = sadd.s32 %s326, 1
      %p330 = scmp.eq.s32.totalorder %s33, 1
      %p331 = scmp.ne.s32.totalorder %s326, %s328
      %p332 = scmp.eq.s32.totalorder %s33, 0
      %p333 = por %p331, %p332
      %p334 = scmp.ne.s32.totalorder %s326, %s328
      %p335 = scmp.eq.s32.totalorder %s38, 1
      %p336 = por %p334, %p335
      %p337 = scmp.ne.s32.totalorder %s328, %s329
      %p338 = scmp.eq.s32.totalorder %s38, 0
      %p339 = por %p337, %p338
      %p340 = scmp.ne.s32.totalorder %s328, %s329
      %p341 = scmp.eq.s32.totalorder %s39, 1
      %p342 = por %p340, %p341
      %p344 = scmp.ne.s32.totalorder %s329, %s343
      %p345 = scmp.eq.s32.totalorder %s39, 0
      %p346 = por %p344, %p345
      %s348 = sadd.s32 %s347, 1
      %p351 = scmp.eq.s32.totalorder %s33, 1
      %p352 = scmp.ne.s32.totalorder %s347, %s349
      %p353 = scmp.eq.s32.totalorder %s33, 0
      %p354 = por %p352, %p353
      %p355 = scmp.ne.s32.totalorder %s347, %s349
      %p356 = scmp.eq.s32.totalorder %s38, 1
      %p357 = por %p355, %p356
      %p358 = scmp.ne.s32.totalorder %s349, %s350
      %p359 = scmp.eq.s32.totalorder %s38, 0
      %p360 = por %p358, %p359
      %p361 = scmp.ne.s32.totalorder %s349, %s350
      %p362 = scmp.eq.s32.totalorder %s39, 1
      %p363 = por %p361, %p362
      %p365 = scmp.ne.s32.totalorder %s350, %s364
      %p366 = scmp.eq.s32.totalorder %s39, 0
      %p367 = por %p365, %p366
      %s369 = sadd.s32 %s368, 1
      %p372 = scmp.eq.s32.totalorder %s33, 1
      %p373 = scmp.ne.s32.totalorder %s368, %s370
      %p374 = scmp.eq.s32.totalorder %s33, 0
      %p375 = por %p373, %p374
      %p376 = scmp.ne.s32.totalorder %s368, %s370
      %p377 = scmp.eq.s32.totalorder %s38, 1
      %p378 = por %p376, %p377
      %p379 = scmp.ne.s32.totalorder %s370, %s371
      %p380 = scmp.eq.s32.totalorder %s38, 0
      %p381 = por %p379, %p380
      %p382 = scmp.ne.s32.totalorder %s370, %s371
      %p383 = scmp.eq.s32.totalorder %s39, 1
      %p384 = por %p382, %p383
      %p386 = scmp.ne.s32.totalorder %s371, %s385
      %p387 = scmp.eq.s32.totalorder %s39, 0
      %p388 = por %p386, %p387
      %s390 = sadd.s32 %s389, 1
      %p393 = scmp.eq.s32.totalorder %s33, 1
      %p394 = scmp.ne.s32.totalorder %s389, %s391
      %p395 = scmp.eq.s32.totalorder %s33, 0
      %p396 = por %p394, %p395
      %p397 = scmp.ne.s32.totalorder %s389, %s391
      %p398 = scmp.eq.s32.totalorder %s38, 1
      %p399 = por %p397, %p398
      %p400 = scmp.ne.s32.totalorder %s391, %s392
      %p401 = scmp.eq.s32.totalorder %s38, 0
      %p402 = por %p400, %p401
      %p403 = scmp.ne.s32.totalorder %s391, %s392
      %p404 = scmp.eq.s32.totalorder %s39, 1
      %p405 = por %p403, %p404
      %p407 = scmp.ne.s32.totalorder %s392, %s406
      %p408 = scmp.eq.s32.totalorder %s39, 0
      %p409 = por %p407, %p408
      %s410 = ssub.s32 %s41, %s55
      %s411 = ssub.s32 %s40, %s59
      %s412 = sor.u32 %s410, %s411
      %p413 = scmp.eq.s32.totalorder %s412, 0
      %s415 = sadd.s32 %s414, 1
      %s416 = scalar_select %p413, %s414, %s415
      %p419 = pneg %p413
      %p420 = scmp.eq.s32.totalorder %s33, 1
      %p421 = por %p419, %p420
      %p422 = scmp.ne.s32.totalorder %s414, %s417
      %p423 = scmp.eq.s32.totalorder %s33, 0
      %p424 = por %p422, %p423
      %p425 = scmp.ne.s32.totalorder %s414, %s417
      %p426 = scmp.eq.s32.totalorder %s38, 1
      %p427 = por %p425, %p426
      %p428 = scmp.ne.s32.totalorder %s417, %s418
      %p429 = scmp.eq.s32.totalorder %s38, 0
      %p430 = por %p428, %p429
      %p431 = scmp.ne.s32.totalorder %s417, %s418
      %p432 = scmp.eq.s32.totalorder %s39, 1
      %p433 = por %p431, %p432
      %p435 = scmp.ne.s32.totalorder %s418, %s434
      %p436 = scmp.eq.s32.totalorder %s39, 0
      %p437 = por %p435, %p436
      %p438 = scmp.le.s32.totalorder 1, %s33
      %p439 = scmp.lt.s32.totalorder %s33, 3
      %p440 = pnand %p438, %p439
      %p441 = pneg %p440
      // Predicated region
      $region9: #{tpu_custom_call.1} parent=5 // pred_check
        _
      $region10: #{tpu_custom_call.1} parent=5 // pred_check_branch
        %443 = sbr.rel (%p440) target = $region12
      $region11: #{tpu_custom_call.1} parent=5 // pred_region
        %s444 = ssub.s32 %s33, 1
        // Predicated region
        $region13: #{tpu_custom_call.1} parent=11 // pred_check
          %p445 = pneg %p213
        $region14: #{tpu_custom_call.1} parent=11 // pred_check_branch
          %447 = sbr.rel (%p445) target = $region16
        $region15: #{tpu_custom_call.1} parent=11 // pred_region
          %s449 = ssub.s32 1024, 1024
          %450 = vsyncadd [#allocation11], %s449
          %s451 = sshll.u32 [#allocation10], 4
          %s452 = int_to_ptr.vmem [resolvable:$true] %s451
          %457 = dma.hbm_to_vmem [thread:$0]  %s5, 1024, %s452, [#allocation11], 64, 64, 4
        $region16: #{tpu_custom_call.1} parent=11 // pred_fallthru
          _
        // Predicated region
        $region17: #{tpu_custom_call.1} parent=11 // pred_check
          %p458 = pneg %p234
        $region18: #{tpu_custom_call.1} parent=11 // pred_check_branch
          %460 = sbr.rel (%p458) target = $region20
        $region19: #{tpu_custom_call.1} parent=11 // pred_region
          %s462 = ssub.s32 1024, 1024
          %463 = vsyncadd [#allocation11], %s462
          %s464 = sshll.u32 [#allocation12], 4
          %s465 = int_to_ptr.vmem [resolvable:$true] %s464
          %470 = dma.hbm_to_vmem [thread:$0]  %s6, 1024, %s465, [#allocation11], 64, 64, 4
        $region20: #{tpu_custom_call.1} parent=11 // pred_fallthru
          _
        // Predicated region
        $region21: #{tpu_custom_call.1} parent=11 // pred_check
          %p471 = pneg %p255
        $region22: #{tpu_custom_call.1} parent=11 // pred_check_branch
          %473 = sbr.rel (%p471) target = $region24
        $region23: #{tpu_custom_call.1} parent=11 // pred_region
          %s475 = ssub.s32 1024, 1024
          %476 = vsyncadd [#allocation14], %s475
          %s477 = sshll.u32 [#allocation13], 4
          %s478 = int_to_ptr.vmem [resolvable:$true] %s477
          %483 = dma.hbm_to_vmem [thread:$0]  %s7, 1024, %s478, [#allocation14], 64, 64, 4
        $region24: #{tpu_custom_call.1} parent=11 // pred_fallthru
          _
        // Predicated region
        $region25: #{tpu_custom_call.1} parent=11 // pred_check
          %p484 = pneg %p276
        $region26: #{tpu_custom_call.1} parent=11 // pred_check_branch
          %486 = sbr.rel (%p484) target = $region28
        $region27: #{tpu_custom_call.1} parent=11 // pred_region
          _
        $region28: #{tpu_custom_call.1} parent=11 // pred_fallthru
          _
        // Predicated region
        $region29: #{tpu_custom_call.1} parent=11 // pred_check
          %p487 = pneg %p297
        $region30: #{tpu_custom_call.1} parent=11 // pred_check_branch
          %489 = sbr.rel (%p487) target = $region32
        $region31: #{tpu_custom_call.1} parent=11 // pred_region
          %s491 = ssub.s32 1024, 1024
          %492 = vsyncadd [#allocation14], %s491
          %s493 = sshll.u32 [#allocation15], 4
          %s494 = int_to_ptr.vmem [resolvable:$true] %s493
          %499 = dma.hbm_to_vmem [thread:$0]  %s9, 1024, %s494, [#allocation14], 64, 64, 4
        $region32: #{tpu_custom_call.1} parent=11 // pred_fallthru
          _
        // Predicated region
        $region33: #{tpu_custom_call.1} parent=11 // pred_check
          %p500 = pneg %p318
        $region34: #{tpu_custom_call.1} parent=11 // pred_check_branch
          %502 = sbr.rel (%p500) target = $region36
        $region35: #{tpu_custom_call.1} parent=11 // pred_region
          _
        $region36: #{tpu_custom_call.1} parent=11 // pred_fallthru
          _
        // Predicated region
        $region37: #{tpu_custom_call.1} parent=11 // pred_check
          %p503 = pneg %p339
        $region38: #{tpu_custom_call.1} parent=11 // pred_check_branch
          %505 = sbr.rel (%p503) target = $region40
        $region39: #{tpu_custom_call.1} parent=11 // pred_region
          %s507 = ssub.s32 1024, 1024
          %508 = vsyncadd [#allocation17], %s507
          %s509 = sshll.u32 [#allocation16], 4
          %s510 = int_to_ptr.vmem [resolvable:$true] %s509
          %515 = dma.hbm_to_vmem [thread:$0]  %s11, 1024, %s510, [#allocation17], 64, 64, 4
        $region40: #{tpu_custom_call.1} parent=11 // pred_fallthru
          _
        // Predicated region
        $region41: #{tpu_custom_call.1} parent=11 // pred_check
          %p516 = pneg %p360
        $region42: #{tpu_custom_call.1} parent=11 // pred_check_branch
          %518 = sbr.rel (%p516) target = $region44
        $region43: #{tpu_custom_call.1} parent=11 // pred_region
          _
        $region44: #{tpu_custom_call.1} parent=11 // pred_fallthru
          _
        // Predicated region
        $region45: #{tpu_custom_call.1} parent=11 // pred_check
          %p519 = pneg %p381
        $region46: #{tpu_custom_call.1} parent=11 // pred_check_branch
          %521 = sbr.rel (%p519) target = $region48
        $region47: #{tpu_custom_call.1} parent=11 // pred_region
          _
        $region48: #{tpu_custom_call.1} parent=11 // pred_fallthru
          _
        // Predicated region
        $region49: #{tpu_custom_call.1} parent=11 // pred_check
          %p522 = pneg %p402
        $region50: #{tpu_custom_call.1} parent=11 // pred_check_branch
          %524 = sbr.rel (%p522) target = $region52
        $region51: #{tpu_custom_call.1} parent=11 // pred_region
          _
        $region52: #{tpu_custom_call.1} parent=11 // pred_fallthru
          _
      $region12: #{tpu_custom_call.1} parent=5 // pred_fallthru
        _
      %p525 = scmp.lt.s32.totalorder %s33, 2
      // Predicated region
      $region53: #{tpu_custom_call.1} parent=5 // pred_check
        %p526 = pneg %p525
      $region54: #{tpu_custom_call.1} parent=5 // pred_check_branch
        %528 = sbr.rel (%p526) target = $region56
      $region55: #{tpu_custom_call.1} parent=5 // pred_region
        // Predicated region
        $region57: #{tpu_custom_call.1} parent=55 // pred_check
          %p529 = pneg %p74
        $region58: #{tpu_custom_call.1} parent=55 // pred_check_branch
          %531 = sbr.rel (%p529) target = $region60
        $region59: #{tpu_custom_call.1} parent=55 // pred_region
          %s532 = sand.u32 %s64, 1
          %s533 = scalar_lea.sflag [#allocation5], %s532
          %s534 = sand.u32 %s64, 1
          %s535 = smul.addr %s534, 16
          %s536 = scalar_lea.vmem [#allocation4], %s535
          %s537 = smul.u32 2, %s40
          %s539 = ssub.s32 256, 256
          %540 = vsyncadd %s533, %s539
          %s541 = smul.addr %s41, 2
          %s542 = sadd.s32 %s537, %s541
          %s543 = smul.addr %s542, 128
          %s544 = scalar_lea.hbm %s0, %s543
          %s545 = sshll.u32 %s536, 4
          %s546 = int_to_ptr.vmem [resolvable:$true] %s545
          %551 = dma.hbm_to_vmem [thread:$0]  %s544, 256, %s546, %s533, 128, 128, 8
        $region60: #{tpu_custom_call.1} parent=55 // pred_fallthru
          _
        // Predicated region
        $region61: #{tpu_custom_call.1} parent=55 // pred_check
          %p552 = pneg %p102
        $region62: #{tpu_custom_call.1} parent=55 // pred_check_branch
          %554 = sbr.rel (%p552) target = $region64
        $region63: #{tpu_custom_call.1} parent=55 // pred_region
          %s555 = sand.u32 %s33, 1
          %s556 = scalar_lea.sflag [#allocation8], %s555
          %s557 = sand.u32 %s92, 1
          %s558 = smul.addr %s557, 64
          %s559 = scalar_lea.vmem [#allocation7], %s558
          %s560 = smul.u32 16, %s42
          %s562 = ssub.s32 1024, 1024
          %563 = vsyncadd %s556, %s562
          %s564 = smul.addr %s41, 16
          %s565 = sadd.s32 %s560, %s564
          %s566 = smul.addr %s565, 64
          %s567 = scalar_lea.hbm %s1, %s566
          %s568 = sshll.u32 %s559, 4
          %s569 = int_to_ptr.vmem [resolvable:$true] %s568
          %574 = dma.hbm_to_vmem [thread:$0]  %s567, 1024, %s569, %s556, 64, 64, 4
        $region64: #{tpu_custom_call.1} parent=55 // pred_fallthru
          _
        // Predicated region
        $region65: #{tpu_custom_call.1} parent=55 // pred_check
          %p575 = pneg %p130
        $region66: #{tpu_custom_call.1} parent=55 // pred_check_branch
          %577 = sbr.rel (%p575) target = $region68
        $region67: #{tpu_custom_call.1} parent=55 // pred_region
          %p578 = scmp.lt.s32.totalorder %s41, 1
          %s579 = scalar_select %p578, %s41, 1
          %p580 = scmp.lt.s32.totalorder %s42, 0
          %s581 = scalar_select %p580, %s42, 0
          %s582 = sadd.s32 %s581, %s579
          %s583 = scalar_lea.vmem %s2, %s582
        $region68: #{tpu_custom_call.1} parent=55 // pred_fallthru
          _
        // Predicated region
        $region69: #{tpu_custom_call.1} parent=55 // pred_check
          %p584 = pneg %p158
        $region70: #{tpu_custom_call.1} parent=55 // pred_check_branch
          %586 = sbr.rel (%p584) target = $region72
        $region71: #{tpu_custom_call.1} parent=55 // pred_region
          %s587 = sand.u32 %s33, 1
          %s588 = scalar_lea.sflag [#allocation8], %s587
          %s589 = sand.u32 %s148, 1
          %s590 = smul.addr %s589, 64
          %s591 = scalar_lea.vmem [#allocation9], %s590
          %s592 = smul.u32 16, %s42
          %s594 = ssub.s32 1024, 1024
          %595 = vsyncadd %s588, %s594
          %s596 = smul.addr %s41, 16
          %s597 = sadd.s32 %s592, %s596
          %s598 = smul.addr %s597, 64
          %s599 = scalar_lea.hbm %s3, %s598
          %s600 = sshll.u32 %s591, 4
          %s601 = int_to_ptr.vmem [resolvable:$true] %s600
          %606 = dma.hbm_to_vmem [thread:$0]  %s599, 1024, %s601, %s588, 64, 64, 4
        $region72: #{tpu_custom_call.1} parent=55 // pred_fallthru
          _
        // Predicated region
        $region73: #{tpu_custom_call.1} parent=55 // pred_check
          %p607 = pneg %p186
        $region74: #{tpu_custom_call.1} parent=55 // pred_check_branch
          %609 = sbr.rel (%p607) target = $region76
        $region75: #{tpu_custom_call.1} parent=55 // pred_region
          %p610 = scmp.lt.s32.totalorder %s41, 1
          %s611 = scalar_select %p610, %s41, 1
          %p612 = scmp.lt.s32.totalorder %s42, 0
          %s613 = scalar_select %p612, %s42, 0
          %s614 = sadd.s32 %s613, %s611
          %s615 = scalar_lea.vmem %s4, %s614
        $region76: #{tpu_custom_call.1} parent=55 // pred_fallthru
          _
      $region56: #{tpu_custom_call.1} parent=5 // pred_fallthru
        _
      %p616 = scmp.le.s32.totalorder 1, %s33
      %p617 = scmp.lt.s32.totalorder %s33, 3
      %p618 = pnand %p616, %p617
      %p619 = pneg %p618
      // Predicated region
      $region77: #{tpu_custom_call.1} parent=5 // pred_check
        _
      $region78: #{tpu_custom_call.1} parent=5 // pred_check_branch
        %621 = sbr.rel (%p618) target = $region80
      $region79: #{tpu_custom_call.1} parent=5 // pred_region
        %s622 = ssub.s32 %s33, 1
        %s623 = sand.u32 %s67, 1
        %s624 = scalar_lea.sflag [#allocation5], %s623
        %s625 = sand.u32 %s67, 1
        %s626 = smul.addr %s625, 16
        %s627 = scalar_lea.vmem [#allocation4], %s626
        // Predicated region
        $region81: #{tpu_custom_call.1} parent=79 // pred_check
          %p628 = pneg %p80
        $region82: #{tpu_custom_call.1} parent=79 // pred_check_branch
          %630 = sbr.rel (%p628) target = $region84
        $region83: #{tpu_custom_call.1} parent=79 // pred_region
          %631 = dma.done %s624, 256
        $region84: #{tpu_custom_call.1} parent=79 // pred_fallthru
          _
        %s632 = sand.u32 %s38, 1
        %s633 = scalar_lea.sflag [#allocation8], %s632
        %s634 = sand.u32 %s95, 1
        %s635 = smul.addr %s634, 64
        %s636 = scalar_lea.vmem [#allocation7], %s635
        // Predicated region
        $region85: #{tpu_custom_call.1} parent=79 // pred_check
          %p637 = pneg %p108
        $region86: #{tpu_custom_call.1} parent=79 // pred_check_branch
          %639 = sbr.rel (%p637) target = $region88
        $region87: #{tpu_custom_call.1} parent=79 // pred_region
          %640 = dma.done %s633, 1024
        $region88: #{tpu_custom_call.1} parent=79 // pred_fallthru
          _
        %s641 = sand.u32 %s38, 1
        %s642 = scalar_lea.sflag [#allocation8], %s641
        %s643 = sand.u32 %s151, 1
        %s644 = smul.addr %s643, 64
        %s645 = scalar_lea.vmem [#allocation9], %s644
        // Predicated region
        $region89: #{tpu_custom_call.1} parent=79 // pred_check
          %p646 = pneg %p164
        $region90: #{tpu_custom_call.1} parent=79 // pred_check_branch
          %648 = sbr.rel (%p646) target = $region92
        $region91: #{tpu_custom_call.1} parent=79 // pred_region
          %649 = dma.done %s642, 1024
        $region92: #{tpu_custom_call.1} parent=79 // pred_fallthru
          _
        // Predicated region
        $region93: #{tpu_custom_call.1} parent=79 // pred_check
          %p650 = pneg %p213
        $region94: #{tpu_custom_call.1} parent=79 // pred_check_branch
          %652 = sbr.rel (%p650) target = $region96
        $region95: #{tpu_custom_call.1} parent=79 // pred_region
          %653 = dma.done [#allocation11], 1024
        $region96: #{tpu_custom_call.1} parent=79 // pred_fallthru
          _
        // Predicated region
        $region97: #{tpu_custom_call.1} parent=79 // pred_check
          %p654 = pneg %p234
        $region98: #{tpu_custom_call.1} parent=79 // pred_check_branch
          %656 = sbr.rel (%p654) target = $region100
        $region99: #{tpu_custom_call.1} parent=79 // pred_region
          %657 = dma.done [#allocation11], 1024
        $region100: #{tpu_custom_call.1} parent=79 // pred_fallthru
          _
        // Predicated region
        $region101: #{tpu_custom_call.1} parent=79 // pred_check
          %p658 = pneg %p255
        $region102: #{tpu_custom_call.1} parent=79 // pred_check_branch
          %660 = sbr.rel (%p658) target = $region104
        $region103: #{tpu_custom_call.1} parent=79 // pred_region
          %661 = dma.done [#allocation14], 1024
        $region104: #{tpu_custom_call.1} parent=79 // pred_fallthru
          _
        // Predicated region
        $region105: #{tpu_custom_call.1} parent=79 // pred_check
          %p662 = pneg %p297
        $region106: #{tpu_custom_call.1} parent=79 // pred_check_branch
          %664 = sbr.rel (%p662) target = $region108
        $region107: #{tpu_custom_call.1} parent=79 // pred_region
          %665 = dma.done [#allocation14], 1024
        $region108: #{tpu_custom_call.1} parent=79 // pred_fallthru
          _
        // Predicated region
        $region109: #{tpu_custom_call.1} parent=79 // pred_check
          %p666 = pneg %p339
        $region110: #{tpu_custom_call.1} parent=79 // pred_check_branch
          %668 = sbr.rel (%p666) target = $region112
        $region111: #{tpu_custom_call.1} parent=79 // pred_region
          %669 = dma.done [#allocation17], 1024
        $region112: #{tpu_custom_call.1} parent=79 // pred_fallthru
          _
        %s670 = sand.u32 %s67, 1
        %s671 = scalar_lea.sflag [#allocation5], %s670
        %s672 = sand.u32 %s67, 1
        %s673 = smul.addr %s672, 16
        %s674 = scalar_lea.vmem [#allocation4], %s673
        %p675 = pneg %p80
        %p676 = pneg %p77
        %s677 = sand.u32 %s38, 1
        %s678 = scalar_lea.sflag [#allocation8], %s677
        %s679 = sand.u32 %s95, 1
        %s680 = smul.addr %s679, 64
        %s681 = scalar_lea.vmem [#allocation7], %s680
        %p682 = pneg %p108
        %p683 = pneg %p105
        %p684 = scmp.lt.s32.totalorder %s44, 1
        %s685 = scalar_select %p684, %s44, 1
        %p686 = scmp.lt.s32.totalorder %s45, 0
        %s687 = scalar_select %p686, %s45, 0
        %s688 = sadd.s32 %s687, %s685
        %s689 = scalar_lea.vmem %s2, %s688
        %p690 = pneg %p136
        %p691 = pneg %p133
        %s692 = sand.u32 %s38, 1
        %s693 = scalar_lea.sflag [#allocation8], %s692
        %s694 = sand.u32 %s151, 1
        %s695 = smul.addr %s694, 64
        %s696 = scalar_lea.vmem [#allocation9], %s695
        %p697 = pneg %p164
        %p698 = pneg %p161
        %p699 = scmp.lt.s32.totalorder %s44, 1
        %s700 = scalar_select %p699, %s44, 1
        %p701 = scmp.lt.s32.totalorder %s45, 0
        %s702 = scalar_select %p701, %s45, 0
        %s703 = sadd.s32 %s702, %s700
        %s704 = scalar_lea.vmem %s4, %s703
        %p705 = pneg %p192
        %p706 = pneg %p189
        %p707 = pneg %p213
        %p708 = pneg %p210
        %p709 = pneg %p234
        %p710 = pneg %p231
        %p711 = pneg %p255
        %p712 = pneg %p252
        %p713 = pneg %p276
        %p714 = pneg %p273
        %p715 = pneg %p297
        %p716 = pneg %p294
        %p717 = pneg %p318
        %p718 = pneg %p315
        %p719 = pneg %p339
        %p720 = pneg %p336
        %p721 = pneg %p360
        %p722 = pneg %p357
        %p723 = pneg %p381
        %p724 = pneg %p378
        %p725 = pneg %p402
        %p726 = pneg %p399
        %p727 = pneg %p430
        %p728 = pneg %p427
        %s729 = sand.u32 %s417, 1
        %s730 = scalar_lea.sflag [#allocation6], %s729
        %s731 = sand.u32 %s417, 1
        %s732 = smul.addr %s731, 16
        %s733 = scalar_lea.vmem [#allocation18], %s732
        %s734 = smul.u32 2, %s43
        %s735 = smul.u32 16, %s45
        %p736 = scmp.lt.s32.totalorder %s44, 1
        %s737 = scalar_select %p736, %s44, 1
        %p738 = scmp.lt.s32.totalorder %s45, 0
        %s739 = scalar_select %p738, %s45, 0
        %s740 = sadd.s32 %s739, %s737
        %s741 = scalar_lea.vmem %s2, %s740
        %s742 = smul.u32 16, %s45
        %p743 = scmp.lt.s32.totalorder %s44, 1
        %s744 = scalar_select %p743, %s44, 1
        %p745 = scmp.lt.s32.totalorder %s45, 0
        %s746 = scalar_select %p745, %s45, 0
        %s747 = sadd.s32 %s746, %s744
        %s748 = scalar_lea.vmem %s4, %s747
        %s749 = smul.u32 2, %s43
        %p751 = scmp.eq.s32.totalorder %s45, 0
        // Predicated region
        $region113: #{tpu_custom_call.1} parent=79 // pred_check
          %p752 = pneg %p751
        $region114: #{tpu_custom_call.1} parent=79 // pred_check_branch
          %754 = sbr.rel (%p752) target = $region116
        $region115: #{tpu_custom_call.1} parent=79 // pred_region
          %755 = vst [vmem:[#allocation2] sm:$0xff] 0.0
          %756 = vst [vmem:[#allocation2 + $0x8] sm:$0xff] 0.0
          %757 = vst [vmem:[#allocation3] sm:$0xff] 0.0
          %758 = vst [vmem:[#allocation3 + $0x8] sm:$0xff] 0.0
        $region116: #{tpu_custom_call.1} parent=79 // pred_fallthru
          _
        %v759 = vld [vmem:[%s636] sm:$0xf]
        %v760 = vld [vmem:[%s636 + $0x4] sm:$0xf]
        %v761 = vld [vmem:[%s636 + $0x8] sm:$0xf]
        %v762 = vld [vmem:[%s636 + $0xc] sm:$0xf]
        %v763 = vld [vmem:[%s636 + $0x10] sm:$0xf]
        %v764 = vld [vmem:[%s636 + $0x14] sm:$0xf]
        %v765 = vld [vmem:[%s636 + $0x18] sm:$0xf]
        %v766 = vld [vmem:[%s636 + $0x1c] sm:$0xf]
        %v767 = vld [vmem:[%s636 + $0x20] sm:$0xf]
        %v768 = vld [vmem:[%s636 + $0x24] sm:$0xf]
        %v769 = vld [vmem:[%s636 + $0x28] sm:$0xf]
        %v770 = vld [vmem:[%s636 + $0x2c] sm:$0xf]
        %v771 = vld [vmem:[%s636 + $0x30] sm:$0xf]
        %v772 = vld [vmem:[%s636 + $0x34] sm:$0xf]
        %v773 = vld [vmem:[%s636 + $0x38] sm:$0xf]
        %v774 = vld [vmem:[%s636 + $0x3c] sm:$0xf]
        %v775 = vld [vmem:[%s741] sm:$0x1]
        %s776 = smul.u32 %s43, 16
        %v777 = vstv %s776
        %v778 = vsub.s32 %v775, %v777
        %v779 = vlaneseq
        %v780 = vshrl.u32 %v779, 7
        %v781 = vadd.s32 %v780, 8
        %v782 = vlaneseq
        %v783 = vshrl.u32 %v782, 7
        %v784 = vsub.s32 0, %v783
        %v785 = vrot.slane %v778, %v784
        %vm786 = vcmp.eq.s32.totalorder %v780, %v785
        %vm787 = vcmp.eq.s32.totalorder %v781, %v785
        %v788 = vsel %vm786, 1, 0
        %v789 = vsel %vm787, 1, 0
        %v790 = vcvt.s32.f32 %v788
        %v791 = vcvt.s32.f32 %v789
        %v792 = vpack.c.bf16 %v791, %v790
        %v793 = vld [vmem:[#allocation2] sm:$0xff]
        %v794 = vld [vmem:[#allocation2 + $0x8] sm:$0xff]
        %v811 = vunpack.c.l.b16 %v759
        %v812 = vunpack.c.l.b16 %v760
        %v813 = vunpack.c.l.b16 %v761
        %v814 = vunpack.c.l.b16 %v762
        %v815 = vunpack.c.l.b16 %v763
        %v816 = vunpack.c.l.b16 %v764
        %v817 = vunpack.c.l.b16 %v765
        %v818 = vunpack.c.l.b16 %v766
        %v819 = vunpack.c.l.b16 %v767
        %v820 = vunpack.c.l.b16 %v768
        %v821 = vunpack.c.l.b16 %v769
        %v822 = vunpack.c.l.b16 %v770
        %v823 = vunpack.c.l.b16 %v771
        %v824 = vunpack.c.l.b16 %v772
        %v825 = vunpack.c.l.b16 %v773
        %v826 = vunpack.c.l.b16 %v774
        %v827 = vpack.c.b16 %v812, %v811
        %v828 = vpack.c.b16 %v814, %v813
        %v829 = vpack.c.b16 %v816, %v815
        %v830 = vpack.c.b16 %v818, %v817
        %v831 = vpack.c.b16 %v820, %v819
        %v832 = vpack.c.b16 %v822, %v821
        %v833 = vpack.c.b16 %v824, %v823
        %v834 = vpack.c.b16 %v826, %v825
        %843 = vmatprep.subr.bf16.mxu0 0
        %844 = vmatpush1.bf16.msra.mxu0 %v834
        %845 = vmatprep.subr.bf16.mxu0 0
        %846 = vmatpush1.bf16.msra.mxu0 %v833
        %847 = vmatprep.subr.bf16.mxu0 0
        %848 = vmatpush1.bf16.msra.mxu0 %v832
        %849 = vmatprep.subr.bf16.mxu0 0
        %850 = vmatpush1.bf16.msra.mxu0 %v831
        %851 = vmatprep.subr.bf16.mxu0 0
        %852 = vmatpush1.bf16.msra.mxu0 %v830
        %853 = vmatprep.subr.bf16.mxu0 0
        %854 = vmatpush1.bf16.msra.mxu0 %v829
        %855 = vmatprep.subr.bf16.mxu0 0
        %856 = vmatpush1.bf16.msra.mxu0 %v828
        %857 = vmatprep.subr.bf16.mxu0 0
        %858 = vmatpush1.bf16.msra.mxu0 %v827
        %859 = vmatprep.subr.bf16.mxu0 0
        %860 = vmatpush2.bf16.msra.mxu0 0
        %861 = vmatprep.subr.bf16.mxu0 0
        %862 = vmatpush2.bf16.msra.mxu0 0
        %863 = vmatprep.subr.bf16.mxu0 0
        %864 = vmatpush2.bf16.msra.mxu0 0
        %865 = vmatprep.subr.bf16.mxu0 0
        %866 = vmatpush2.bf16.msra.mxu0 0
        %867 = vmatprep.subr.bf16.mxu0 0
        %868 = vmatpush2.bf16.msra.mxu0 0
        %869 = vmatprep.subr.bf16.mxu0 0
        %870 = vmatpush2.bf16.msra.mxu0 0
        %871 = vmatprep.subr.bf16.mxu0 0
        %872 = vmatpush2.bf16.msra.mxu0 0
        %873 = vmatprep.subr.bf16.mxu0 0
        %874 = vmatpush2.bf16.msra.mxu0 0
        %875 = vmatprep.mubr.bf16.mxu0 0
        %876 = vmatmul.mubr.bf16.gmra.mxu0 %v792
        %v877 = vpop.f32.mrf.mxu0
        %v878 = vadd.f32 0.0, %v877
        %v879 = vpop.f32.mrf.mxu0
        %v880 = vpop.f32.mrf.mxu0
        %v881 = vadd.f32 0.0, %v880
        %v882 = vpop.f32.mrf.mxu0
        %883 = vdwg.mxu0
        %v884 = vadd.f32 %v793, %v878
        %v885 = vadd.f32 %v794, %v881
        %886 = vst [vmem:[#allocation2] sm:$0xff] %v884
        %887 = vst [vmem:[#allocation2 + $0x8] sm:$0xff] %v885
        %v888 = vld [vmem:[%s645] sm:$0xf]
        %v889 = vld [vmem:[%s645 + $0x4] sm:$0xf]
        %v890 = vld [vmem:[%s645 + $0x8] sm:$0xf]
        %v891 = vld [vmem:[%s645 + $0xc] sm:$0xf]
        %v892 = vld [vmem:[%s645 + $0x10] sm:$0xf]
        %v893 = vld [vmem:[%s645 + $0x14] sm:$0xf]
        %v894 = vld [vmem:[%s645 + $0x18] sm:$0xf]
        %v895 = vld [vmem:[%s645 + $0x1c] sm:$0xf]
        %v896 = vld [vmem:[%s645 + $0x20] sm:$0xf]
        %v897 = vld [vmem:[%s645 + $0x24] sm:$0xf]
        %v898 = vld [vmem:[%s645 + $0x28] sm:$0xf]
        %v899 = vld [vmem:[%s645 + $0x2c] sm:$0xf]
        %v900 = vld [vmem:[%s645 + $0x30] sm:$0xf]
        %v901 = vld [vmem:[%s645 + $0x34] sm:$0xf]
        %v902 = vld [vmem:[%s645 + $0x38] sm:$0xf]
        %v903 = vld [vmem:[%s645 + $0x3c] sm:$0xf]
        %v904 = vld [vmem:[%s748] sm:$0x1]
        %v905 = vsub.s32 %v904, %v777
        %v906 = vlaneseq
        %v907 = vshrl.u32 %v906, 7
        %v908 = vsub.s32 0, %v907
        %v909 = vrot.slane %v905, %v908
        %vm910 = vcmp.eq.s32.totalorder %v780, %v909
        %vm911 = vcmp.eq.s32.totalorder %v781, %v909
        %v912 = vsel %vm910, 1, 0
        %v913 = vsel %vm911, 1, 0
        %v914 = vcvt.s32.f32 %v912
        %v915 = vcvt.s32.f32 %v913
        %v916 = vpack.c.bf16 %v915, %v914
        %v917 = vld [vmem:[#allocation3] sm:$0xff]
        %v918 = vld [vmem:[#allocation3 + $0x8] sm:$0xff]
        %v935 = vunpack.c.l.b16 %v888
        %v936 = vunpack.c.l.b16 %v889
        %v937 = vunpack.c.l.b16 %v890
        %v938 = vunpack.c.l.b16 %v891
        %v939 = vunpack.c.l.b16 %v892
        %v940 = vunpack.c.l.b16 %v893
        %v941 = vunpack.c.l.b16 %v894
        %v942 = vunpack.c.l.b16 %v895
        %v943 = vunpack.c.l.b16 %v896
        %v944 = vunpack.c.l.b16 %v897
        %v945 = vunpack.c.l.b16 %v898
        %v946 = vunpack.c.l.b16 %v899
        %v947 = vunpack.c.l.b16 %v900
        %v948 = vunpack.c.l.b16 %v901
        %v949 = vunpack.c.l.b16 %v902
        %v950 = vunpack.c.l.b16 %v903
        %v951 = vpack.c.b16 %v936, %v935
        %v952 = vpack.c.b16 %v938, %v937
        %v953 = vpack.c.b16 %v940, %v939
        %v954 = vpack.c.b16 %v942, %v941
        %v955 = vpack.c.b16 %v944, %v943
        %v956 = vpack.c.b16 %v946, %v945
        %v957 = vpack.c.b16 %v948, %v947
        %v958 = vpack.c.b16 %v950, %v949
        %967 = vmatprep.subr.bf16.mxu0 0
        %968 = vmatpush1.bf16.msra.mxu0 %v958
        %969 = vmatprep.subr.bf16.mxu0 0
        %970 = vmatpush1.bf16.msra.mxu0 %v957
        %971 = vmatprep.subr.bf16.mxu0 0
        %972 = vmatpush1.bf16.msra.mxu0 %v956
        %973 = vmatprep.subr.bf16.mxu0 0
        %974 = vmatpush1.bf16.msra.mxu0 %v955
        %975 = vmatprep.subr.bf16.mxu0 0
        %976 = vmatpush1.bf16.msra.mxu0 %v954
        %977 = vmatprep.subr.bf16.mxu0 0
        %978 = vmatpush1.bf16.msra.mxu0 %v953
        %979 = vmatprep.subr.bf16.mxu0 0
        %980 = vmatpush1.bf16.msra.mxu0 %v952
        %981 = vmatprep.subr.bf16.mxu0 0
        %982 = vmatpush1.bf16.msra.mxu0 %v951
        %983 = vmatprep.subr.bf16.mxu0 0
        %984 = vmatpush2.bf16.msra.mxu0 0
        %985 = vmatprep.subr.bf16.mxu0 0
        %986 = vmatpush2.bf16.msra.mxu0 0
        %987 = vmatprep.subr.bf16.mxu0 0
        %988 = vmatpush2.bf16.msra.mxu0 0
        %989 = vmatprep.subr.bf16.mxu0 0
        %990 = vmatpush2.bf16.msra.mxu0 0
        %991 = vmatprep.subr.bf16.mxu0 0
        %992 = vmatpush2.bf16.msra.mxu0 0
        %993 = vmatprep.subr.bf16.mxu0 0
        %994 = vmatpush2.bf16.msra.mxu0 0
        %995 = vmatprep.subr.bf16.mxu0 0
        %996 = vmatpush2.bf16.msra.mxu0 0
        %997 = vmatprep.subr.bf16.mxu0 0
        %998 = vmatpush2.bf16.msra.mxu0 0
        %999 = vmatprep.mubr.bf16.mxu0 0
        %1000 = vmatmul.mubr.bf16.gmra.mxu0 %v916
        %v1001 = vpop.f32.mrf.mxu0
        %v1002 = vadd.f32 0.0, %v1001
        %v1003 = vpop.f32.mrf.mxu0
        %v1004 = vpop.f32.mrf.mxu0
        %v1005 = vadd.f32 0.0, %v1004
        %v1006 = vpop.f32.mrf.mxu0
        %1007 = vdwg.mxu0
        %v1008 = vadd.f32 %v917, %v1002
        %v1009 = vadd.f32 %v918, %v1005
        %1010 = vst [vmem:[#allocation3] sm:$0xff] %v1008
        %1011 = vst [vmem:[#allocation3 + $0x8] sm:$0xff] %v1009
        // Predicated region
        $region117: #{tpu_custom_call.1} parent=79 // pred_check
          %p1012 = pneg %p751
        $region118: #{tpu_custom_call.1} parent=79 // pred_check_branch
          %1014 = sbr.rel (%p1012) target = $region120
        $region119: #{tpu_custom_call.1} parent=79 // pred_region
          %v1015 = vld [vmem:[%s627] sm:$0xff]
          %v1016 = vld [vmem:[%s627 + $0x8] sm:$0xff]
          %v1017 = vpack.c.bf16 %v1016, %v1015
          %v1018 = vld [vmem:[#allocation10] sm:$0xf]
          %v1019 = vld [vmem:[#allocation10 + $0x4] sm:$0xf]
          %v1020 = vld [vmem:[#allocation10 + $0x8] sm:$0xf]
          %v1021 = vld [vmem:[#allocation10 + $0xc] sm:$0xf]
          %v1022 = vld [vmem:[#allocation10 + $0x10] sm:$0xf]
          %v1023 = vld [vmem:[#allocation10 + $0x14] sm:$0xf]
          %v1024 = vld [vmem:[#allocation10 + $0x18] sm:$0xf]
          %v1025 = vld [vmem:[#allocation10 + $0x1c] sm:$0xf]
          %v1026 = vld [vmem:[#allocation10 + $0x20] sm:$0xf]
          %v1027 = vld [vmem:[#allocation10 + $0x24] sm:$0xf]
          %v1028 = vld [vmem:[#allocation10 + $0x28] sm:$0xf]
          %v1029 = vld [vmem:[#allocation10 + $0x2c] sm:$0xf]
          %v1030 = vld [vmem:[#allocation10 + $0x30] sm:$0xf]
          %v1031 = vld [vmem:[#allocation10 + $0x34] sm:$0xf]
          %v1032 = vld [vmem:[#allocation10 + $0x38] sm:$0xf]
          %v1033 = vld [vmem:[#allocation10 + $0x3c] sm:$0xf]
          %v1034 = vld [vmem:[#allocation2] sm:$0xff]
          %v1035 = vld [vmem:[#allocation2 + $0x8] sm:$0xff]
          %v1036 = vmax.f32 %v1034, 1.0
          %v1037 = vmax.f32 %v1035, 1.0
          %v1038 = vrcp.pop %v1036
          %v1039 = vrcp.pop %v1037
          %1041 = vset.pattern.permute.xlu0 32
          %1042 = vperm.xlu0 %1041, %v1038
          %v1043 = vpop.permute.xlu0 %1042
          %1046 = vset.pattern.permute.xlu0 32
          %1047 = vperm.xlu0 %1046, %v1039
          %v1048 = vpop.permute.xlu0 %1047
          %v1050 = vmul.f32 %v1034, %v1043
          %v1051 = vmul.f32 %v1035, %v1048
          %v1052 = vpack.c.bf16 %v1051, %v1050
          %v1053 = vld [vmem:[#allocation12] sm:$0xf]
          %v1054 = vld [vmem:[#allocation12 + $0x4] sm:$0xf]
          %v1055 = vld [vmem:[#allocation12 + $0x8] sm:$0xf]
          %v1056 = vld [vmem:[#allocation12 + $0xc] sm:$0xf]
          %v1057 = vld [vmem:[#allocation12 + $0x10] sm:$0xf]
          %v1058 = vld [vmem:[#allocation12 + $0x14] sm:$0xf]
          %v1059 = vld [vmem:[#allocation12 + $0x18] sm:$0xf]
          %v1060 = vld [vmem:[#allocation12 + $0x1c] sm:$0xf]
          %v1061 = vld [vmem:[#allocation12 + $0x20] sm:$0xf]
          %v1062 = vld [vmem:[#allocation12 + $0x24] sm:$0xf]
          %v1063 = vld [vmem:[#allocation12 + $0x28] sm:$0xf]
          %v1064 = vld [vmem:[#allocation12 + $0x2c] sm:$0xf]
          %v1065 = vld [vmem:[#allocation12 + $0x30] sm:$0xf]
          %v1066 = vld [vmem:[#allocation12 + $0x34] sm:$0xf]
          %v1067 = vld [vmem:[#allocation12 + $0x38] sm:$0xf]
          %v1068 = vld [vmem:[#allocation12 + $0x3c] sm:$0xf]
          %v1085 = vunpack.c.l.b16 %v1053
          %v1086 = vunpack.c.l.b16 %v1054
          %v1087 = vunpack.c.l.b16 %v1055
          %v1088 = vunpack.c.l.b16 %v1056
          %v1089 = vunpack.c.l.b16 %v1057
          %v1090 = vunpack.c.l.b16 %v1058
          %v1091 = vunpack.c.l.b16 %v1059
          %v1092 = vunpack.c.l.b16 %v1060
          %v1093 = vunpack.c.l.b16 %v1061
          %v1094 = vunpack.c.l.b16 %v1062
          %v1095 = vunpack.c.l.b16 %v1063
          %v1096 = vunpack.c.l.b16 %v1064
          %v1097 = vunpack.c.l.b16 %v1065
          %v1098 = vunpack.c.l.b16 %v1066
          %v1099 = vunpack.c.l.b16 %v1067
          %v1100 = vunpack.c.l.b16 %v1068
          %v1101 = vpack.c.b16 %v1086, %v1085
          %v1102 = vpack.c.b16 %v1088, %v1087
          %v1103 = vpack.c.b16 %v1090, %v1089
          %v1104 = vpack.c.b16 %v1092, %v1091
          %v1105 = vpack.c.b16 %v1094, %v1093
          %v1106 = vpack.c.b16 %v1096, %v1095
          %v1107 = vpack.c.b16 %v1098, %v1097
          %v1108 = vpack.c.b16 %v1100, %v1099
          %1117 = vmatprep.subr.bf16.mxu0 0
          %1118 = vmatpush1.bf16.msra.mxu0 %v1108
          %1119 = vmatprep.subr.bf16.mxu0 0
          %1120 = vmatpush1.bf16.msra.mxu0 %v1107
          %1121 = vmatprep.subr.bf16.mxu0 0
          %1122 = vmatpush1.bf16.msra.mxu0 %v1106
          %1123 = vmatprep.subr.bf16.mxu0 0
          %1124 = vmatpush1.bf16.msra.mxu0 %v1105
          %1125 = vmatprep.subr.bf16.mxu0 0
          %1126 = vmatpush1.bf16.msra.mxu0 %v1104
          %1127 = vmatprep.subr.bf16.mxu0 0
          %1128 = vmatpush1.bf16.msra.mxu0 %v1103
          %1129 = vmatprep.subr.bf16.mxu0 0
          %1130 = vmatpush1.bf16.msra.mxu0 %v1102
          %1131 = vmatprep.subr.bf16.mxu0 0
          %1132 = vmatpush1.bf16.msra.mxu0 %v1101
          %1133 = vmatprep.subr.bf16.mxu0 0
          %1134 = vmatpush2.bf16.msra.mxu0 0
          %1135 = vmatprep.subr.bf16.mxu0 0
          %1136 = vmatpush2.bf16.msra.mxu0 0
          %1137 = vmatprep.subr.bf16.mxu0 0
          %1138 = vmatpush2.bf16.msra.mxu0 0
          %1139 = vmatprep.subr.bf16.mxu0 0
          %1140 = vmatpush2.bf16.msra.mxu0 0
          %1141 = vmatprep.subr.bf16.mxu0 0
          %1142 = vmatpush2.bf16.msra.mxu0 0
          %1143 = vmatprep.subr.bf16.mxu0 0
          %1144 = vmatpush2.bf16.msra.mxu0 0
          %1145 = vmatprep.subr.bf16.mxu0 0
          %1146 = vmatpush2.bf16.msra.mxu0 0
          %1147 = vmatprep.subr.bf16.mxu0 0
          %1148 = vmatpush2.bf16.msra.mxu0 0
          %1149 = vmatprep.mubr.bf16.mxu0 0
          %1150 = vmatmul.mubr.bf16.gmra.mxu0 %v1052
          %v1151 = vpop.f32.mrf.mxu0
          %v1152 = vadd.f32 0.0, %v1151
          %v1153 = vpop.f32.mrf.mxu0
          %v1154 = vpop.f32.mrf.mxu0
          %v1155 = vadd.f32 0.0, %v1154
          %v1156 = vpop.f32.mrf.mxu0
          %1157 = vdwg.mxu0
          %v1174 = vunpack.c.l.b16 %v1018
          %v1175 = vunpack.c.l.b16 %v1019
          %v1176 = vunpack.c.l.b16 %v1020
          %v1177 = vunpack.c.l.b16 %v1021
          %v1178 = vunpack.c.l.b16 %v1022
          %v1179 = vunpack.c.l.b16 %v1023
          %v1180 = vunpack.c.l.b16 %v1024
          %v1181 = vunpack.c.l.b16 %v1025
          %v1182 = vunpack.c.l.b16 %v1026
          %v1183 = vunpack.c.l.b16 %v1027
          %v1184 = vunpack.c.l.b16 %v1028
          %v1185 = vunpack.c.l.b16 %v1029
          %v1186 = vunpack.c.l.b16 %v1030
          %v1187 = vunpack.c.l.b16 %v1031
          %v1188 = vunpack.c.l.b16 %v1032
          %v1189 = vunpack.c.l.b16 %v1033
          %v1190 = vpack.c.b16 %v1175, %v1174
          %v1191 = vpack.c.b16 %v1177, %v1176
          %v1192 = vpack.c.b16 %v1179, %v1178
          %v1193 = vpack.c.b16 %v1181, %v1180
          %v1194 = vpack.c.b16 %v1183, %v1182
          %v1195 = vpack.c.b16 %v1185, %v1184
          %v1196 = vpack.c.b16 %v1187, %v1186
          %v1197 = vpack.c.b16 %v1189, %v1188
          %1206 = vmatprep.subr.bf16.mxu0 0
          %1207 = vmatpush1.bf16.msra.mxu0 %v1197
          %1208 = vmatprep.subr.bf16.mxu0 0
          %1209 = vmatpush1.bf16.msra.mxu0 %v1196
          %1210 = vmatprep.subr.bf16.mxu0 0
          %1211 = vmatpush1.bf16.msra.mxu0 %v1195
          %1212 = vmatprep.subr.bf16.mxu0 0
          %1213 = vmatpush1.bf16.msra.mxu0 %v1194
          %1214 = vmatprep.subr.bf16.mxu0 0
          %1215 = vmatpush1.bf16.msra.mxu0 %v1193
          %1216 = vmatprep.subr.bf16.mxu0 0
          %1217 = vmatpush1.bf16.msra.mxu0 %v1192
          %1218 = vmatprep.subr.bf16.mxu0 0
          %1219 = vmatpush1.bf16.msra.mxu0 %v1191
          %1220 = vmatprep.subr.bf16.mxu0 0
          %1221 = vmatpush1.bf16.msra.mxu0 %v1190
          %1222 = vmatprep.subr.bf16.mxu0 0
          %1223 = vmatpush2.bf16.msra.mxu0 0
          %1224 = vmatprep.subr.bf16.mxu0 0
          %1225 = vmatpush2.bf16.msra.mxu0 0
          %1226 = vmatprep.subr.bf16.mxu0 0
          %1227 = vmatpush2.bf16.msra.mxu0 0
          %1228 = vmatprep.subr.bf16.mxu0 0
          %1229 = vmatpush2.bf16.msra.mxu0 0
          %1230 = vmatprep.subr.bf16.mxu0 0
          %1231 = vmatpush2.bf16.msra.mxu0 0
          %1232 = vmatprep.subr.bf16.mxu0 0
          %1233 = vmatpush2.bf16.msra.mxu0 0
          %1234 = vmatprep.subr.bf16.mxu0 0
          %1235 = vmatpush2.bf16.msra.mxu0 0
          %1236 = vmatprep.subr.bf16.mxu0 0
          %1237 = vmatpush2.bf16.msra.mxu0 0
          %1238 = vmatprep.mubr.bf16.mxu0 0
          %1239 = vmatmul.mubr.bf16.gmra.mxu0 %v1017
          %v1240 = vpop.f32.mrf.mxu0
          %v1241 = vadd.f32 %v1152, %v1240
          %v1242 = vpop.f32.mrf.mxu0
          %v1243 = vpop.f32.mrf.mxu0
          %v1244 = vadd.f32 %v1155, %v1243
          %v1245 = vpop.f32.mrf.mxu0
          %1246 = vdwg.mxu0
          %v1247 = vld [vmem:[#allocation3] sm:$0xff]
          %v1248 = vld [vmem:[#allocation3 + $0x8] sm:$0xff]
          %v1249 = vmax.f32 %v1247, 1.0
          %v1250 = vmax.f32 %v1248, 1.0
          %v1251 = vrcp.pop %v1249
          %v1252 = vrcp.pop %v1250
          %1254 = vset.pattern.permute.xlu0 16
          %1255 = vperm.xlu0 %1254, %v1251
          %v1256 = vpop.permute.xlu0 %1255
          %1259 = vset.pattern.permute.xlu0 16
          %1260 = vperm.xlu0 %1259, %v1252
          %v1261 = vpop.permute.xlu0 %1260
          %v1263 = vmul.f32 %v1247, %v1256
          %v1264 = vmul.f32 %v1248, %v1261
          %v1265 = vpack.c.bf16 %v1264, %v1263
          %v1266 = vld [vmem:[#allocation13] sm:$0xf]
          %v1267 = vld [vmem:[#allocation13 + $0x4] sm:$0xf]
          %v1268 = vld [vmem:[#allocation13 + $0x8] sm:$0xf]
          %v1269 = vld [vmem:[#allocation13 + $0xc] sm:$0xf]
          %v1270 = vld [vmem:[#allocation13 + $0x10] sm:$0xf]
          %v1271 = vld [vmem:[#allocation13 + $0x14] sm:$0xf]
          %v1272 = vld [vmem:[#allocation13 + $0x18] sm:$0xf]
          %v1273 = vld [vmem:[#allocation13 + $0x1c] sm:$0xf]
          %v1274 = vld [vmem:[#allocation13 + $0x20] sm:$0xf]
          %v1275 = vld [vmem:[#allocation13 + $0x24] sm:$0xf]
          %v1276 = vld [vmem:[#allocation13 + $0x28] sm:$0xf]
          %v1277 = vld [vmem:[#allocation13 + $0x2c] sm:$0xf]
          %v1278 = vld [vmem:[#allocation13 + $0x30] sm:$0xf]
          %v1279 = vld [vmem:[#allocation13 + $0x34] sm:$0xf]
          %v1280 = vld [vmem:[#allocation13 + $0x38] sm:$0xf]
          %v1281 = vld [vmem:[#allocation13 + $0x3c] sm:$0xf]
          %v1298 = vunpack.c.l.b16 %v1266
          %v1299 = vunpack.c.l.b16 %v1267
          %v1300 = vunpack.c.l.b16 %v1268
          %v1301 = vunpack.c.l.b16 %v1269
          %v1302 = vunpack.c.l.b16 %v1270
          %v1303 = vunpack.c.l.b16 %v1271
          %v1304 = vunpack.c.l.b16 %v1272
          %v1305 = vunpack.c.l.b16 %v1273
          %v1306 = vunpack.c.l.b16 %v1274
          %v1307 = vunpack.c.l.b16 %v1275
          %v1308 = vunpack.c.l.b16 %v1276
          %v1309 = vunpack.c.l.b16 %v1277
          %v1310 = vunpack.c.l.b16 %v1278
          %v1311 = vunpack.c.l.b16 %v1279
          %v1312 = vunpack.c.l.b16 %v1280
          %v1313 = vunpack.c.l.b16 %v1281
          %v1314 = vpack.c.b16 %v1299, %v1298
          %v1315 = vpack.c.b16 %v1301, %v1300
          %v1316 = vpack.c.b16 %v1303, %v1302
          %v1317 = vpack.c.b16 %v1305, %v1304
          %v1318 = vpack.c.b16 %v1307, %v1306
          %v1319 = vpack.c.b16 %v1309, %v1308
          %v1320 = vpack.c.b16 %v1311, %v1310
          %v1321 = vpack.c.b16 %v1313, %v1312
          %1330 = vmatprep.subr.bf16.mxu0 0
          %1331 = vmatpush1.bf16.msra.mxu0 %v1321
          %1332 = vmatprep.subr.bf16.mxu0 0
          %1333 = vmatpush1.bf16.msra.mxu0 %v1320
          %1334 = vmatprep.subr.bf16.mxu0 0
          %1335 = vmatpush1.bf16.msra.mxu0 %v1319
          %1336 = vmatprep.subr.bf16.mxu0 0
          %1337 = vmatpush1.bf16.msra.mxu0 %v1318
          %1338 = vmatprep.subr.bf16.mxu0 0
          %1339 = vmatpush1.bf16.msra.mxu0 %v1317
          %1340 = vmatprep.subr.bf16.mxu0 0
          %1341 = vmatpush1.bf16.msra.mxu0 %v1316
          %1342 = vmatprep.subr.bf16.mxu0 0
          %1343 = vmatpush1.bf16.msra.mxu0 %v1315
          %1344 = vmatprep.subr.bf16.mxu0 0
          %1345 = vmatpush1.bf16.msra.mxu0 %v1314
          %1346 = vmatprep.subr.bf16.mxu0 0
          %1347 = vmatpush2.bf16.msra.mxu0 0
          %1348 = vmatprep.subr.bf16.mxu0 0
          %1349 = vmatpush2.bf16.msra.mxu0 0
          %1350 = vmatprep.subr.bf16.mxu0 0
          %1351 = vmatpush2.bf16.msra.mxu0 0
          %1352 = vmatprep.subr.bf16.mxu0 0
          %1353 = vmatpush2.bf16.msra.mxu0 0
          %1354 = vmatprep.subr.bf16.mxu0 0
          %1355 = vmatpush2.bf16.msra.mxu0 0
          %1356 = vmatprep.subr.bf16.mxu0 0
          %1357 = vmatpush2.bf16.msra.mxu0 0
          %1358 = vmatprep.subr.bf16.mxu0 0
          %1359 = vmatpush2.bf16.msra.mxu0 0
          %1360 = vmatprep.subr.bf16.mxu0 0
          %1361 = vmatpush2.bf16.msra.mxu0 0
          %1362 = vmatprep.mubr.bf16.mxu0 0
          %1363 = vmatmul.mubr.bf16.gmra.mxu0 %v1265
          %v1364 = vpop.f32.mrf.mxu0
          %v1365 = vadd.f32 0.0, %v1364
          %v1366 = vpop.f32.mrf.mxu0
          %v1367 = vpop.f32.mrf.mxu0
          %v1368 = vadd.f32 0.0, %v1367
          %v1369 = vpop.f32.mrf.mxu0
          %1370 = vdwg.mxu0
          %v1371 = vadd.f32 %v1241, %v1365
          %v1372 = vadd.f32 %v1244, %v1368
          %v1373 = vld [vmem:[%s8] sm:$0x1]
          %v1375 = vlaneseq
          %v1376 = vshrl.u32 %v1375, 7
          %v1377 = vsub.s32 0, %v1376
          %v1378 = vrot.slane %v1373, %v1377
          %v1380 = vadd.f32 %v1371, %v1378
          %v1381 = vadd.f32 %v1372, %v1378
          %v1382 = vmax.f32 %v1380, 0.0
          %v1383 = vmax.f32 %v1381, 0.0
          %v1384 = vpack.c.bf16 %v1383, %v1382
          %v1385 = vld [vmem:[#allocation15] sm:$0xf]
          %v1386 = vld [vmem:[#allocation15 + $0x4] sm:$0xf]
          %v1387 = vld [vmem:[#allocation15 + $0x8] sm:$0xf]
          %v1388 = vld [vmem:[#allocation15 + $0xc] sm:$0xf]
          %v1389 = vld [vmem:[#allocation15 + $0x10] sm:$0xf]
          %v1390 = vld [vmem:[#allocation15 + $0x14] sm:$0xf]
          %v1391 = vld [vmem:[#allocation15 + $0x18] sm:$0xf]
          %v1392 = vld [vmem:[#allocation15 + $0x1c] sm:$0xf]
          %v1393 = vld [vmem:[#allocation15 + $0x20] sm:$0xf]
          %v1394 = vld [vmem:[#allocation15 + $0x24] sm:$0xf]
          %v1395 = vld [vmem:[#allocation15 + $0x28] sm:$0xf]
          %v1396 = vld [vmem:[#allocation15 + $0x2c] sm:$0xf]
          %v1397 = vld [vmem:[#allocation15 + $0x30] sm:$0xf]
          %v1398 = vld [vmem:[#allocation15 + $0x34] sm:$0xf]
          %v1399 = vld [vmem:[#allocation15 + $0x38] sm:$0xf]
          %v1400 = vld [vmem:[#allocation15 + $0x3c] sm:$0xf]
          %v1401 = vld [vmem:[%s10] sm:$0x1]
          %v1403 = vlaneseq
          %v1404 = vshrl.u32 %v1403, 7
          %v1405 = vsub.s32 0, %v1404
          %v1406 = vrot.slane %v1401, %v1405
          %v1424 = vunpack.c.l.b16 %v1385
          %v1425 = vunpack.c.l.b16 %v1386
          %v1426 = vunpack.c.l.b16 %v1387
          %v1427 = vunpack.c.l.b16 %v1388
          %v1428 = vunpack.c.l.b16 %v1389
          %v1429 = vunpack.c.l.b16 %v1390
          %v1430 = vunpack.c.l.b16 %v1391
          %v1431 = vunpack.c.l.b16 %v1392
          %v1432 = vunpack.c.l.b16 %v1393
          %v1433 = vunpack.c.l.b16 %v1394
          %v1434 = vunpack.c.l.b16 %v1395
          %v1435 = vunpack.c.l.b16 %v1396
          %v1436 = vunpack.c.l.b16 %v1397
          %v1437 = vunpack.c.l.b16 %v1398
          %v1438 = vunpack.c.l.b16 %v1399
          %v1439 = vunpack.c.l.b16 %v1400
          %v1440 = vpack.c.b16 %v1425, %v1424
          %v1441 = vpack.c.b16 %v1427, %v1426
          %v1442 = vpack.c.b16 %v1429, %v1428
          %v1443 = vpack.c.b16 %v1431, %v1430
          %v1444 = vpack.c.b16 %v1433, %v1432
          %v1445 = vpack.c.b16 %v1435, %v1434
          %v1446 = vpack.c.b16 %v1437, %v1436
          %v1447 = vpack.c.b16 %v1439, %v1438
          %1456 = vmatprep.subr.bf16.mxu0 0
          %1457 = vmatpush1.bf16.msra.mxu0 %v1447
          %1458 = vmatprep.subr.bf16.mxu0 0
          %1459 = vmatpush1.bf16.msra.mxu0 %v1446
          %1460 = vmatprep.subr.bf16.mxu0 0
          %1461 = vmatpush1.bf16.msra.mxu0 %v1445
          %1462 = vmatprep.subr.bf16.mxu0 0
          %1463 = vmatpush1.bf16.msra.mxu0 %v1444
          %1464 = vmatprep.subr.bf16.mxu0 0
          %1465 = vmatpush1.bf16.msra.mxu0 %v1443
          %1466 = vmatprep.subr.bf16.mxu0 0
          %1467 = vmatpush1.bf16.msra.mxu0 %v1442
          %1468 = vmatprep.subr.bf16.mxu0 0
          %1469 = vmatpush1.bf16.msra.mxu0 %v1441
          %1470 = vmatprep.subr.bf16.mxu0 0
          %1471 = vmatpush1.bf16.msra.mxu0 %v1440
          %1472 = vmatprep.subr.bf16.mxu0 0
          %1473 = vmatpush2.bf16.msra.mxu0 0
          %1474 = vmatprep.subr.bf16.mxu0 0
          %1475 = vmatpush2.bf16.msra.mxu0 0
          %1476 = vmatprep.subr.bf16.mxu0 0
          %1477 = vmatpush2.bf16.msra.mxu0 0
          %1478 = vmatprep.subr.bf16.mxu0 0
          %1479 = vmatpush2.bf16.msra.mxu0 0
          %1480 = vmatprep.subr.bf16.mxu0 0
          %1481 = vmatpush2.bf16.msra.mxu0 0
          %1482 = vmatprep.subr.bf16.mxu0 0
          %1483 = vmatpush2.bf16.msra.mxu0 0
          %1484 = vmatprep.subr.bf16.mxu0 0
          %1485 = vmatpush2.bf16.msra.mxu0 0
          %1486 = vmatprep.subr.bf16.mxu0 0
          %1487 = vmatpush2.bf16.msra.mxu0 0
          %1488 = vmatprep.mubr.bf16.mxu0 0
          %1489 = vmatmul.mubr.bf16.gmra.mxu0 %v1384
          %v1490 = vpop.f32.mrf.mxu0
          %v1491 = vadd.f32 %v1406, %v1490
          %v1492 = vpop.f32.mrf.mxu0
          %v1493 = vpop.f32.mrf.mxu0
          %v1494 = vadd.f32 %v1406, %v1493
          %v1495 = vpop.f32.mrf.mxu0
          %1496 = vdwg.mxu0
          %v1497 = vmax.f32 %v1491, 0.0
          %v1498 = vmax.f32 %v1494, 0.0
          %v1499 = vpack.c.bf16 %v1498, %v1497
          %v1500 = vld [vmem:[#allocation16] sm:$0xf]
          %v1501 = vld [vmem:[#allocation16 + $0x4] sm:$0xf]
          %v1502 = vld [vmem:[#allocation16 + $0x8] sm:$0xf]
          %v1503 = vld [vmem:[#allocation16 + $0xc] sm:$0xf]
          %v1504 = vld [vmem:[#allocation16 + $0x10] sm:$0xf]
          %v1505 = vld [vmem:[#allocation16 + $0x14] sm:$0xf]
          %v1506 = vld [vmem:[#allocation16 + $0x18] sm:$0xf]
          %v1507 = vld [vmem:[#allocation16 + $0x1c] sm:$0xf]
          %v1508 = vld [vmem:[#allocation16 + $0x20] sm:$0xf]
          %v1509 = vld [vmem:[#allocation16 + $0x24] sm:$0xf]
          %v1510 = vld [vmem:[#allocation16 + $0x28] sm:$0xf]
          %v1511 = vld [vmem:[#allocation16 + $0x2c] sm:$0xf]
          %v1512 = vld [vmem:[#allocation16 + $0x30] sm:$0xf]
          %v1513 = vld [vmem:[#allocation16 + $0x34] sm:$0xf]
          %v1514 = vld [vmem:[#allocation16 + $0x38] sm:$0xf]
          %v1515 = vld [vmem:[#allocation16 + $0x3c] sm:$0xf]
          %v1516 = vld [vmem:[%s12] sm:$0x1]
          %v1518 = vlaneseq
          %v1519 = vshrl.u32 %v1518, 7
          %v1520 = vsub.s32 0, %v1519
          %v1521 = vrot.slane %v1516, %v1520
          %v1539 = vunpack.c.l.b16 %v1500
          %v1540 = vunpack.c.l.b16 %v1501
          %v1541 = vunpack.c.l.b16 %v1502
          %v1542 = vunpack.c.l.b16 %v1503
          %v1543 = vunpack.c.l.b16 %v1504
          %v1544 = vunpack.c.l.b16 %v1505
          %v1545 = vunpack.c.l.b16 %v1506
          %v1546 = vunpack.c.l.b16 %v1507
          %v1547 = vunpack.c.l.b16 %v1508
          %v1548 = vunpack.c.l.b16 %v1509
          %v1549 = vunpack.c.l.b16 %v1510
          %v1550 = vunpack.c.l.b16 %v1511
          %v1551 = vunpack.c.l.b16 %v1512
          %v1552 = vunpack.c.l.b16 %v1513
          %v1553 = vunpack.c.l.b16 %v1514
          %v1554 = vunpack.c.l.b16 %v1515
          %v1555 = vpack.c.b16 %v1540, %v1539
          %v1556 = vpack.c.b16 %v1542, %v1541
          %v1557 = vpack.c.b16 %v1544, %v1543
          %v1558 = vpack.c.b16 %v1546, %v1545
          %v1559 = vpack.c.b16 %v1548, %v1547
          %v1560 = vpack.c.b16 %v1550, %v1549
          %v1561 = vpack.c.b16 %v1552, %v1551
          %v1562 = vpack.c.b16 %v1554, %v1553
          %1571 = vmatprep.subr.bf16.mxu0 0
          %1572 = vmatpush1.bf16.msra.mxu0 %v1562
          %1573 = vmatprep.subr.bf16.mxu0 0
          %1574 = vmatpush1.bf16.msra.mxu0 %v1561
          %1575 = vmatprep.subr.bf16.mxu0 0
          %1576 = vmatpush1.bf16.msra.mxu0 %v1560
          %1577 = vmatprep.subr.bf16.mxu0 0
          %1578 = vmatpush1.bf16.msra.mxu0 %v1559
          %1579 = vmatprep.subr.bf16.mxu0 0
          %1580 = vmatpush1.bf16.msra.mxu0 %v1558
          %1581 = vmatprep.subr.bf16.mxu0 0
          %1582 = vmatpush1.bf16.msra.mxu0 %v1557
          %1583 = vmatprep.subr.bf16.mxu0 0
          %1584 = vmatpush1.bf16.msra.mxu0 %v1556
          %1585 = vmatprep.subr.bf16.mxu0 0
          %1586 = vmatpush1.bf16.msra.mxu0 %v1555
          %1587 = vmatprep.subr.bf16.mxu0 0
          %1588 = vmatpush2.bf16.msra.mxu0 0
          %1589 = vmatprep.subr.bf16.mxu0 0
          %1590 = vmatpush2.bf16.msra.mxu0 0
          %1591 = vmatprep.subr.bf16.mxu0 0
          %1592 = vmatpush2.bf16.msra.mxu0 0
          %1593 = vmatprep.subr.bf16.mxu0 0
          %1594 = vmatpush2.bf16.msra.mxu0 0
          %1595 = vmatprep.subr.bf16.mxu0 0
          %1596 = vmatpush2.bf16.msra.mxu0 0
          %1597 = vmatprep.subr.bf16.mxu0 0
          %1598 = vmatpush2.bf16.msra.mxu0 0
          %1599 = vmatprep.subr.bf16.mxu0 0
          %1600 = vmatpush2.bf16.msra.mxu0 0
          %1601 = vmatprep.subr.bf16.mxu0 0
          %1602 = vmatpush2.bf16.msra.mxu0 0
          %1603 = vmatprep.mubr.bf16.mxu0 0
          %1604 = vmatmul.mubr.bf16.gmra.mxu0 %v1499
          %v1605 = vpop.f32.mrf.mxu0
          %v1606 = vadd.f32 %v1521, %v1605
          %v1607 = vpop.f32.mrf.mxu0
          %v1608 = vpop.f32.mrf.mxu0
          %v1609 = vadd.f32 %v1521, %v1608
          %v1610 = vpop.f32.mrf.mxu0
          %1611 = vdwg.mxu0
          %v1612 = vlaneseq
          %v1613 = vand.u32 %v1612, 127
          %vm1614 = vcmp.lt.s32.totalorder %v1613, 32
          %v1615 = vsel %vm1614, 1, 0
          %v1616 = vcvt.s32.f32 %v1615
          %v1617 = vmul.f32 %v1606, %v1616
          %v1618 = vmul.f32 %v1609, %v1616
          %1619 = vadd.xlane.f32.xlu0 %v1617
          %v1620 = vpop.xlane.xlu0 %1619
          %1621 = vadd.xlane.f32.xlu0 %v1618
          %v1622 = vpop.xlane.xlu0 %1621
          %v1623 = vmul.f32 %v1620, 0.03125
          %v1624 = vmul.f32 %v1622, 0.03125
          %v1625 = vsub.f32 %v1606, %v1623
          %v1626 = vsub.f32 %v1609, %v1624
          %v1627 = vmul.f32 %v1625, %v1616
          %v1628 = vmul.f32 %v1626, %v1616
          %v1629 = vmul.f32 %v1627, %v1627
          %v1630 = vmul.f32 %v1628, %v1628
          %1631 = vadd.xlane.f32.xlu0 %v1629
          %v1632 = vpop.xlane.xlu0 %1631
          %1633 = vadd.xlane.f32.xlu0 %v1630
          %v1634 = vpop.xlane.xlu0 %1633
          %v1635 = vmul.f32 %v1632, 0.03125
          %v1636 = vmul.f32 %v1634, 0.03125
          %v1637 = vadd.f32 %v1635, 1e-05
          %v1638 = vadd.f32 %v1636, 1e-05
          %v1639 = vrsqrt.pop %v1637
          %v1640 = vrsqrt.pop %v1638
          %v1641 = vmul.f32 %v1627, %v1639
          %v1642 = vmul.f32 %v1628, %v1640
          %v1643 = vld [vmem:[%s13] sm:$0x1]
          %v1645 = vlaneseq
          %v1646 = vshrl.u32 %v1645, 7
          %v1647 = vsub.s32 0, %v1646
          %v1648 = vrot.slane %v1643, %v1647
          %v1650 = vmul.f32 %v1641, %v1648
          %v1651 = vmul.f32 %v1642, %v1648
          %v1652 = vld [vmem:[%s14] sm:$0x1]
          %v1654 = vlaneseq
          %v1655 = vshrl.u32 %v1654, 7
          %v1656 = vsub.s32 0, %v1655
          %v1657 = vrot.slane %v1652, %v1656
          %v1659 = vadd.f32 %v1650, %v1657
          %v1660 = vadd.f32 %v1651, %v1657
          %v1661 = vadd.f32 %v1015, %v1659
          %v1662 = vadd.f32 %v1016, %v1660
          %1663 = vst [vmem:[%s733] sm:$0xff] %v1661
          %1664 = vst [vmem:[%s733 + $0x8] sm:$0xff] %v1662
        $region120: #{tpu_custom_call.1} parent=79 // pred_fallthru
          _
        %s1665 = sand.u32 %s417, 1
        %s1666 = scalar_lea.sflag [#allocation6], %s1665
        %s1667 = sand.u32 %s417, 1
        %s1668 = smul.addr %s1667, 16
        %s1669 = scalar_lea.vmem [#allocation18], %s1668
        // Predicated region
        $region121: #{tpu_custom_call.1} parent=79 // pred_check
          %p1670 = pneg %p427
        $region122: #{tpu_custom_call.1} parent=79 // pred_check_branch
          %1672 = sbr.rel (%p1670) target = $region124
        $region123: #{tpu_custom_call.1} parent=79 // pred_region
          %s1673 = smul.u32 2, %s43
          %s1675 = ssub.s32 256, 256
          %1676 = vsyncadd %s1666, %s1675
          %s1677 = smul.addr %s44, 2
          %s1678 = sadd.s32 %s1673, %s1677
          %s1679 = smul.addr %s1678, 128
          %s1680 = scalar_lea.hbm %s15, %s1679
          %s1681 = sshll.u32 %s1669, 4
          %s1682 = int_to_ptr.vmem [resolvable:$true] %s1681
          %1687 = dma.vmem_to_hbm [thread:$0]  %s1682, 256, %s1680, %s1666, 128, 128, 8
        $region124: #{tpu_custom_call.1} parent=79 // pred_fallthru
          _
      $region80: #{tpu_custom_call.1} parent=5 // pred_fallthru
        _
      %p1688 = scmp.le.s32.totalorder 2, %s33
      // Predicated region
      $region125: #{tpu_custom_call.1} parent=5 // pred_check
        %p1689 = pneg %p1688
      $region126: #{tpu_custom_call.1} parent=5 // pred_check_branch
        %1691 = sbr.rel (%p1689) target = $region128
      $region127: #{tpu_custom_call.1} parent=5 // pred_region
        %s1692 = ssub.s32 %s33, 2
        // Predicated region
        $region129: #{tpu_custom_call.1} parent=127 // pred_check
          %p1693 = pneg %p433
        $region130: #{tpu_custom_call.1} parent=127 // pred_check_branch
          %1695 = sbr.rel (%p1693) target = $region132
        $region131: #{tpu_custom_call.1} parent=127 // pred_region
          %s1696 = sand.u32 %s418, 1
          %s1697 = scalar_lea.sflag [#allocation6], %s1696
          %s1698 = sand.u32 %s418, 1
          %s1699 = smul.addr %s1698, 16
          %s1700 = scalar_lea.vmem [#allocation18], %s1699
          %1701 = dma.done %s1697, 256
        $region132: #{tpu_custom_call.1} parent=127 // pred_fallthru
          _
      $region128: #{tpu_custom_call.1} parent=5 // pred_fallthru
        _
    $region6: #{tpu_custom_call.1} parent=1 // loop_footer
      %s37 = sadd.s32 1, %s33
    $region7: #{tpu_custom_call.1} parent=1 // loop_footer_branch
      %32 = sbr.rel target = $region3
    $region8: #{tpu_custom_call.1} parent=1 // loop_exit
      _
    %1702 = vsyncpa [#allocation5], 1
    %s1703 = scalar_lea.sflag [#allocation5], 1
    %1704 = vsyncpa %s1703, 1
    %1705 = vsyncpa [#allocation8], 1
    %s1706 = scalar_lea.sflag [#allocation8], 1
    %1707 = vsyncpa %s1706, 1
    %1708 = vsyncpa [#allocation11], 1
    %1709 = vsyncpa [#allocation14], 1
    %1710 = vsyncpa [#allocation17], 1
    %1711 = vsyncpa [#allocation6], 1
    %s1712 = scalar_lea.sflag [#allocation6], 1
    %1713 = vsyncpa %s1712, 1

</llo_original>
